<compile_context>
chip_gen: v7x
topology: tpu7x:2x2x1
jax: 0.10.0
libtpu: 0.0.40
codegen_flags: <defaults>
</compile_context>

<pallas_src>
import math
from functools import partial

import jax
import jax.numpy as jnp
from jax import lax
from jax.experimental import pallas as pl
from jax.experimental.pallas import tpu as pltpu

IN_CH = 32  # module default in_channels
_INV_SQRT2 = 1.0 / math.sqrt(2.0)


def _erf_f32(z):
    """erf via Abramowitz & Stegun 7.1.26 (|err| <= 1.5e-7).

    Uses only mul/add/exp/where so it is guaranteed to lower in Mosaic; exp
    lands on the EUP slot, the polynomial is cheap VPU filler on this
    HBM-bound kernel.  Matches torch's exact erf-based GELU to ~1e-7.
    """
    a1, a2, a3, a4, a5 = (0.254829592, -0.284496736, 1.421413741,
                          -1.453152027, 1.061405429)
    p = 0.3275911
    az = jnp.abs(z)
    t = 1.0 / (1.0 + p * az)
    poly = ((((a5 * t + a4) * t + a3) * t + a2) * t + a1) * t
    e = 1.0 - poly * jnp.exp(-(az * az))
    return jnp.where(z >= 0.0, e, -e)


def _gelu_exact(y):
    # TODO(synk): switch to tanh-approx GELU (EUP tanh) only if bundle dumps ever
    # show the VALU slot saturating; erf kept for torch nn.GELU() parity.
    return 0.5 * y * (1.0 + _erf_f32(y * _INV_SQRT2))


def _rfdb_kernel(x_ref, w_ref, b_ref, o_ref, *, b_tile, C, H, W, op_dtype):
    # x_ref : (b_tile, C, H*W)  per-image spatial flattened on the lane axis
    # w_ref : (9, C, C)         c1_r weights, tap-major [(dy,dx), c_out, c_in]
    # b_ref : (C, 1)            c1_r bias (lane-broadcast), f32
    # o_ref : (b_tile, C, H*W)  output r_c1
    HW = H * W

    # Boundary-validity predicates from an in-kernel iota (no mask-table DMA).
    #   col >= 1   <=> lane % W != 0        col < W-1 <=> lane % W != W-1
    #   row >= 1   <=> lane >= W            row < H-1 <=> lane <  (H-1)*W
    lane = lax.broadcasted_iota(jnp.int32, (C, HW), 1)
    col = lane % W
    col_ok = {-1: col != 0, 0: None, 1: col != (W - 1)}
    row_ok = {-1: lane >= W, 0: None, 1: lane < (H - 1) * W}

    bias = b_ref[...]                          # (C, 1) f32, lane-broadcast

    for b in range(b_tile):                    # static unroll; b_tile is small
        xb = x_ref[b]                          # (C, HW) f32, lane-dense
        y = None
        t = 0
        for oy in (-1, 0, 1):
            for ox in (-1, 0, 1):
                s = oy * W + ox                # flat spatial offset of this tap
                if s == 0:
                    patch = xb                 # center tap: no shift, no mask
                else:
                    # out[p] needs x[p+s]; roll wraps inside this image only and
                    # the where() zeroes exactly the wrapped (out-of-bounds) lanes.
                    patch = pltpu.roll(xb, (-s) % HW, axis=1)
                    rm, cm = row_ok[oy], col_ok[ox]
                    mask = rm if cm is None else (cm if rm is None else rm & cm)
                    patch = jnp.where(mask, patch, 0.0)
                contrib = jnp.dot(w_ref[t], patch.astype(op_dtype),
                                  preferred_element_type=jnp.float32)
                y = contrib if y is None else y + contrib
                t += 1
        y = y + xb + bias                      # conv bias + residual, f32
        o_ref[b] = _gelu_exact(y).astype(o_ref.dtype)


def _vmem_capacity_bytes():
    """Physical VMEM of the attached TPU; conservative (v7x, 64 MiB) fallback."""
    try:
        info = pltpu.get_tpu_info()
        for attr in ("vmem_capacity_bytes", "vmem_bytes", "vmem_size_bytes"):
            v = getattr(info, attr, None)
            if v:
                return int(v)
    except Exception:
        pass
    return 64 * 1024 * 1024


def _plan(N, C, H, W, itemsize):
    """Pick the per-step batch tile and a VMEM limit from the tile footprint."""
    HW = H * W
    phys = _vmem_capacity_bytes()
    # Per image: in + out blocks double-buffered (2*2) plus ~5x working set
    # (f32 accumulator, per-tap shifted/masked temporaries, iota/masks).
    per_img = C * HW * itemsize * (2 * 2 + 5)
    budget = int(phys * 0.5)
    bt_cap = max(1, budget // per_img)
    # Keep >= 2 grid steps when N >= 2 so both v7x TensorCores get work.
    bt_target = max(1, min(bt_cap, N // 2 if N >= 2 else N))
    b_tile = 1
    for d in range(1, bt_target + 1):          # largest divisor of N <= target
        if N % d == 0:
            b_tile = d
    params_bytes = (9 * C * C + C) * itemsize * 2
    footprint = per_img * b_tile + params_bytes
    vmem_limit = min(max(int(footprint * 1.25), 32 * 1024 * 1024),
                     int(phys * 0.8))
    return b_tile, vmem_limit


@partial(jax.jit, static_argnames=("b_tile", "vmem_limit", "use_bf16_mxu"))
def _rfdb_call(x_nchw, w_c1r, b_c1r, *, b_tile, vmem_limit, use_bf16_mxu):
    N, C, H, W = x_nchw.shape
    HW = H * W
    op_dtype = jnp.bfloat16 if use_bf16_mxu else jnp.float32

    x = x_nchw.reshape(N, C, HW)               # free reshape, lane-dense spatial
    # OIHW -> (ky, kx, c_out, c_in) -> (9, c_out, c_in); tap order = kernel loop.
    w9 = jnp.transpose(w_c1r, (2, 3, 0, 1)).reshape(9, C, C).astype(op_dtype)
    b = b_c1r.reshape(C, 1).astype(jnp.float32)

    grid = N // b_tile
    out = pl.pallas_call(
        partial(_rfdb_kernel, b_tile=b_tile, C=C, H=H, W=W, op_dtype=op_dtype),
        out_shape=jax.ShapeDtypeStruct((N, C, HW), x_nchw.dtype),
        grid_spec=pltpu.PrefetchScalarGridSpec(
            num_scalar_prefetch=0,
            grid=(grid,),
            in_specs=[
                pl.BlockSpec((b_tile, C, HW), lambda g: (g, 0, 0)),
                pl.BlockSpec((9, C, C), lambda g: (0, 0, 0)),
                pl.BlockSpec((C, 1), lambda g: (0, 0)),
            ],
            out_specs=pl.BlockSpec((b_tile, C, HW), lambda g: (g, 0, 0)),
        ),
        compiler_params=pltpu.CompilerParams(
            dimension_semantics=("parallel",),
            vmem_limit_bytes=vmem_limit,
        ),
    )(x, w9, b)
    return out.reshape(N, C, H, W)


def rfdb_forward(x_nchw, w_c1r, b_c1r, *, use_bf16_mxu=True):
    """x_nchw: (N, C, H, W) float32 (PyTorch layout). Returns r_c1 in NCHW."""
    N, C, H, W = x_nchw.shape
    assert C % 8 == 0 and (H * W) % 128 == 0, "toy-shape tiling assumption"
    # TODO(synk): for large H*W where a whole-image block no longer fits VMEM,
    # add halo row-tiling (block (b, C, TH*W) + 1 halo row above/below via an
    # overlapping index_map or pl.ANY + make_async_copy); size TH per generation
    # from the VMEM budget as in _plan().
    b_tile, vmem_limit = _plan(N, C, H, W, x_nchw.dtype.itemsize)
    return _rfdb_call(x_nchw, w_c1r, b_c1r, b_tile=b_tile,
                      vmem_limit=vmem_limit, use_bf16_mxu=use_bf16_mxu)


def rfdb_ref(x_nchw, w_c1r, b_c1r):
    """Pure-JAX reference of the returned tensor r_c1 (for validation)."""
    y = lax.conv_general_dilated(
        x_nchw, w_c1r, window_strides=(1, 1), padding="SAME",
        dimension_numbers=("NCHW", "OIHW", "NCHW"))
    y = y + b_c1r[None, :, None, None] + x_nchw
    return 0.5 * y * (1.0 + lax.erf(y / jnp.sqrt(2.0)))


if __name__ == "__main__":
    key = jax.random.PRNGKey(0)
    k_x, k_w, k_b = jax.random.split(key, 3)

    N, C, H, W = 2, IN_CH, 16, 16
    x = jax.random.normal(k_x, (N, C, H, W), jnp.float32)

    # Deterministic synthetic c1_r parameters (OIHW), PyTorch-style uniform bound.
    fan_in = C * 3 * 3
    bound = 1.0 / math.sqrt(fan_in)
    w_c1r = jax.random.uniform(k_w, (C, C, 3, 3), jnp.float32, -bound, bound)
    b_c1r = jax.random.uniform(k_b, (C,), jnp.float32, -bound, bound)
    # NOTE: c1_d / c2_d / c2_r parameters exist in the module but their outputs
    # (distilled_c1, distilled_c2, r_c2) are discarded by forward(); they do not
    # affect the returned r_c1 and are elided as dead code, as are the print()s.

    ref = jax.block_until_ready(rfdb_ref(x, w_c1r, b_c1r))

    # Exact f32 MXU path: tight agreement with the reference.
    out_f32 = jax.block_until_ready(
        rfdb_forward(x, w_c1r, b_c1r, use_bf16_mxu=False))
    assert out_f32.shape == (N, C, H, W)
    assert jnp.allclose(out_f32, ref, atol=1e-4, rtol=1e-4), "f32 path mismatch"

    # Default fast path: bf16 MXU operands, f32 accumulation/epilogue
    # (review-sanctioned tolerance relaxation for the bf16 operand cast).
    out = jax.block_until_ready(rfdb_forward(x, w_c1r, b_c1r))
    assert out.shape == (N, C, H, W)
    assert jnp.allclose(out, ref, atol=3e-2, rtol=3e-2), "bf16 path mismatch"

    print("KERNEL_OK")
</pallas_src>

<mosaic_0001>
module attributes {stable_mosaic.version = 11 : i64} {
  func.func @_rfdb_kernel(%arg0: i32, %arg1: memref<1x32x256xf32, #tpu.memory_space<vmem>>, %arg2: memref<9x32x32xf32, #tpu.memory_space<vmem>>, %arg3: memref<32x1xf32, #tpu.memory_space<vmem>>, %arg4: memref<1x32x256xf32, #tpu.memory_space<vmem>>) attributes {dimension_semantics = [#tpu.dimension_semantics<parallel>], iteration_bounds = array<i64: 2>, scalar_prefetch = 0 : i64, scratch_operands = 0 : i64, tpu.core_type = #tpu.core_type<tc>, window_params = [{transform_indices = @transform_0, window_bounds = array<i64: 1, 32, 256>}, {pipeline_mode = #tpu.pipeline_mode<synchronous>, transform_indices = @transform_1, window_bounds = array<i64: 9, 32, 32>}, {pipeline_mode = #tpu.pipeline_mode<synchronous>, transform_indices = @transform_2, window_bounds = array<i64: 32, 1>}, {transform_indices = @transform_3, window_bounds = array<i64: 1, 32, 256>}]} {
    %0 = tpu.iota {dimensions = array<i32: 1>} : vector<32x256xi32>
    %c16_i32 = arith.constant 16 : i32
    %c0_i32 = arith.constant 0 : i32
    %1 = arith.cmpi eq, %c16_i32, %c0_i32 : i32
    %c1_i32 = arith.constant 1 : i32
    %2 = arith.select %1, %c1_i32, %c16_i32 : i32
    %3 = vector.broadcast %2 : i32 to vector<32x256xi32>
    %4 = arith.remsi %0, %3 : vector<32x256xi32>
    %c0_i32_0 = arith.constant 0 : i32
    %5 = vector.broadcast %c0_i32_0 : i32 to vector<32x256xi32>
    %6 = arith.cmpi ne, %4, %5 : vector<32x256xi32>
    %c0_i32_1 = arith.constant 0 : i32
    %7 = vector.broadcast %c0_i32_1 : i32 to vector<32x256xi32>
    %8 = arith.cmpi slt, %4, %7 : vector<32x256xi32>
    %c0_i32_2 = arith.constant 0 : i32
    %9 = arith.cmpi slt, %2, %c0_i32_2 : i32
    %10 = vector.broadcast %9 : i1 to vector<32x256xi1>
    %11 = vector.broadcast %10 : vector<32x256xi1> to vector<32x256xi1>
    %12 = arith.xori %8, %11 : vector<32x256xi1>
    %13 = arith.andi %12, %6 : vector<32x256xi1>
    %14 = vector.broadcast %2 : i32 to vector<32x256xi32>
    %15 = arith.addi %4, %14 : vector<32x256xi32>
    %16 = arith.select %13, %15, %4 : vector<32x256xi1>, vector<32x256xi32>
    %c0_i32_3 = arith.constant 0 : i32
    %17 = vector.broadcast %c0_i32_3 : i32 to vector<32x256xi32>
    %18 = arith.cmpi ne, %16, %17 : vector<32x256xi32>
    %c15_i32 = arith.constant 15 : i32
    %19 = vector.broadcast %c15_i32 : i32 to vector<32x256xi32>
    %20 = arith.cmpi ne, %16, %19 : vector<32x256xi32>
    %c16_i32_4 = arith.constant 16 : i32
    %21 = vector.broadcast %c16_i32_4 : i32 to vector<32x256xi32>
    %22 = arith.cmpi sge, %0, %21 : vector<32x256xi32>
    %c240_i32 = arith.constant 240 : i32
    %23 = vector.broadcast %c240_i32 : i32 to vector<32x256xi32>
    %24 = arith.cmpi slt, %0, %23 : vector<32x256xi32>
    %c0 = arith.constant 0 : index
    %c0_5 = arith.constant 0 : index
    %25 = vector.load %arg3[%c0, %c0_5] : memref<32x1xf32, #tpu.memory_space<vmem>>, vector<32x1xf32>
    %c0_6 = arith.constant 0 : index
    %c0_7 = arith.constant 0 : index
    %c0_8 = arith.constant 0 : index
    %26 = vector.load %arg1[%c0_6, %c0_7, %c0_8] : memref<1x32x256xf32, #tpu.memory_space<vmem>>, vector<1x32x256xf32>
    %27 = vector.shape_cast %26 : vector<1x32x256xf32> to vector<32x256xf32>
    %c17_i32 = arith.constant 17 : i32
    %28 = tpu.dynamic_rotate %27 by %c17_i32 dim 1 : vector<32x256xf32>, i32 -> vector<32x256xf32>
    %29 = arith.andi %22, %18 : vector<32x256xi1>
    %cst = arith.constant 0.000000e+00 : f32
    %30 = vector.broadcast %cst : f32 to vector<32x256xf32>
    %31 = arith.select %29, %28, %30 : vector<32x256xi1>, vector<32x256xf32>
    %c0_9 = arith.constant 0 : index
    %c0_10 = arith.constant 0 : index
    %c0_11 = arith.constant 0 : index
    %32 = vector.load %arg2[%c0_9, %c0_10, %c0_11] : memref<9x32x32xf32, #tpu.memory_space<vmem>>, vector<1x32x32xf32>
    %33 = vector.shape_cast %32 : vector<1x32x32xf32> to vector<32x32xf32>
    %cst_12 = arith.constant dense<0.000000e+00> : vector<32x256xf32>
    %34 = tpu.matmul %33, %31, %cst_12 {dimension_numbers = #tpu.dot_dimension_numbers<[1], [0], [0], [1], [0, 0, 1, 1], [], []>} : vector<32x32xf32>, vector<32x256xf32>, vector<32x256xf32> -> vector<32x256xf32>
    %c16_i32_13 = arith.constant 16 : i32
    %35 = tpu.dynamic_rotate %27 by %c16_i32_13 dim 1 : vector<32x256xf32>, i32 -> vector<32x256xf32>
    %cst_14 = arith.constant 0.000000e+00 : f32
    %36 = vector.broadcast %cst_14 : f32 to vector<32x256xf32>
    %37 = arith.select %22, %35, %36 : vector<32x256xi1>, vector<32x256xf32>
    %c1 = arith.constant 1 : index
    %c0_15 = arith.constant 0 : index
    %c0_16 = arith.constant 0 : index
    %38 = vector.load %arg2[%c1, %c0_15, %c0_16] : memref<9x32x32xf32, #tpu.memory_space<vmem>>, vector<1x32x32xf32>
    %39 = vector.shape_cast %38 : vector<1x32x32xf32> to vector<32x32xf32>
    %cst_17 = arith.constant dense<0.000000e+00> : vector<32x256xf32>
    %40 = tpu.matmul %39, %37, %cst_17 {dimension_numbers = #tpu.dot_dimension_numbers<[1], [0], [0], [1], [0, 0, 1, 1], [], []>} : vector<32x32xf32>, vector<32x256xf32>, vector<32x256xf32> -> vector<32x256xf32>
    %41 = arith.addf %34, %40 : vector<32x256xf32>
    %c15_i32_18 = arith.constant 15 : i32
    %42 = tpu.dynamic_rotate %27 by %c15_i32_18 dim 1 : vector<32x256xf32>, i32 -> vector<32x256xf32>
    %43 = arith.andi %22, %20 : vector<32x256xi1>
    %cst_19 = arith.constant 0.000000e+00 : f32
    %44 = vector.broadcast %cst_19 : f32 to vector<32x256xf32>
    %45 = arith.select %43, %42, %44 : vector<32x256xi1>, vector<32x256xf32>
    %c2 = arith.constant 2 : index
    %c0_20 = arith.constant 0 : index
    %c0_21 = arith.constant 0 : index
    %46 = vector.load %arg2[%c2, %c0_20, %c0_21] : memref<9x32x32xf32, #tpu.memory_space<vmem>>, vector<1x32x32xf32>
    %47 = vector.shape_cast %46 : vector<1x32x32xf32> to vector<32x32xf32>
    %cst_22 = arith.constant dense<0.000000e+00> : vector<32x256xf32>
    %48 = tpu.matmul %47, %45, %cst_22 {dimension_numbers = #tpu.dot_dimension_numbers<[1], [0], [0], [1], [0, 0, 1, 1], [], []>} : vector<32x32xf32>, vector<32x256xf32>, vector<32x256xf32> -> vector<32x256xf32>
    %49 = arith.addf %41, %48 : vector<32x256xf32>
    %c1_i32_23 = arith.constant 1 : i32
    %50 = tpu.dynamic_rotate %27 by %c1_i32_23 dim 1 : vector<32x256xf32>, i32 -> vector<32x256xf32>
    %cst_24 = arith.constant 0.000000e+00 : f32
    %51 = vector.broadcast %cst_24 : f32 to vector<32x256xf32>
    %52 = arith.select %18, %50, %51 : vector<32x256xi1>, vector<32x256xf32>
    %c3 = arith.constant 3 : index
    %c0_25 = arith.constant 0 : index
    %c0_26 = arith.constant 0 : index
    %53 = vector.load %arg2[%c3, %c0_25, %c0_26] : memref<9x32x32xf32, #tpu.memory_space<vmem>>, vector<1x32x32xf32>
    %54 = vector.shape_cast %53 : vector<1x32x32xf32> to vector<32x32xf32>
    %cst_27 = arith.constant dense<0.000000e+00> : vector<32x256xf32>
    %55 = tpu.matmul %54, %52, %cst_27 {dimension_numbers = #tpu.dot_dimension_numbers<[1], [0], [0], [1], [0, 0, 1, 1], [], []>} : vector<32x32xf32>, vector<32x256xf32>, vector<32x256xf32> -> vector<32x256xf32>
    %56 = arith.addf %49, %55 : vector<32x256xf32>
    %c4 = arith.constant 4 : index
    %c0_28 = arith.constant 0 : index
    %c0_29 = arith.constant 0 : index
    %57 = vector.load %arg2[%c4, %c0_28, %c0_29] : memref<9x32x32xf32, #tpu.memory_space<vmem>>, vector<1x32x32xf32>
    %58 = vector.shape_cast %57 : vector<1x32x32xf32> to vector<32x32xf32>
    %cst_30 = arith.constant dense<0.000000e+00> : vector<32x256xf32>
    %59 = tpu.matmul %58, %27, %cst_30 {dimension_numbers = #tpu.dot_dimension_numbers<[1], [0], [0], [1], [0, 0, 1, 1], [], []>} : vector<32x32xf32>, vector<32x256xf32>, vector<32x256xf32> -> vector<32x256xf32>
    %60 = arith.addf %56, %59 : vector<32x256xf32>
    %c255_i32 = arith.constant 255 : i32
    %61 = tpu.dynamic_rotate %27 by %c255_i32 dim 1 : vector<32x256xf32>, i32 -> vector<32x256xf32>
    %cst_31 = arith.constant 0.000000e+00 : f32
    %62 = vector.broadcast %cst_31 : f32 to vector<32x256xf32>
    %63 = arith.select %20, %61, %62 : vector<32x256xi1>, vector<32x256xf32>
    %c5 = arith.constant 5 : index
    %c0_32 = arith.constant 0 : index
    %c0_33 = arith.constant 0 : index
    %64 = vector.load %arg2[%c5, %c0_32, %c0_33] : memref<9x32x32xf32, #tpu.memory_space<vmem>>, vector<1x32x32xf32>
    %65 = vector.shape_cast %64 : vector<1x32x32xf32> to vector<32x32xf32>
    %cst_34 = arith.constant dense<0.000000e+00> : vector<32x256xf32>
    %66 = tpu.matmul %65, %63, %cst_34 {dimension_numbers = #tpu.dot_dimension_numbers<[1], [0], [0], [1], [0, 0, 1, 1], [], []>} : vector<32x32xf32>, vector<32x256xf32>, vector<32x256xf32> -> vector<32x256xf32>
    %67 = arith.addf %60, %66 : vector<32x256xf32>
    %c241_i32 = arith.constant 241 : i32
    %68 = tpu.dynamic_rotate %27 by %c241_i32 dim 1 : vector<32x256xf32>, i32 -> vector<32x256xf32>
    %69 = arith.andi %24, %18 : vector<32x256xi1>
    %cst_35 = arith.constant 0.000000e+00 : f32
    %70 = vector.broadcast %cst_35 : f32 to vector<32x256xf32>
    %71 = arith.select %69, %68, %70 : vector<32x256xi1>, vector<32x256xf32>
    %c6 = arith.constant 6 : index
    %c0_36 = arith.constant 0 : index
    %c0_37 = arith.constant 0 : index
    %72 = vector.load %arg2[%c6, %c0_36, %c0_37] : memref<9x32x32xf32, #tpu.memory_space<vmem>>, vector<1x32x32xf32>
    %73 = vector.shape_cast %72 : vector<1x32x32xf32> to vector<32x32xf32>
    %cst_38 = arith.constant dense<0.000000e+00> : vector<32x256xf32>
    %74 = tpu.matmul %73, %71, %cst_38 {dimension_numbers = #tpu.dot_dimension_numbers<[1], [0], [0], [1], [0, 0, 1, 1], [], []>} : vector<32x32xf32>, vector<32x256xf32>, vector<32x256xf32> -> vector<32x256xf32>
    %75 = arith.addf %67, %74 : vector<32x256xf32>
    %c240_i32_39 = arith.constant 240 : i32
    %76 = tpu.dynamic_rotate %27 by %c240_i32_39 dim 1 : vector<32x256xf32>, i32 -> vector<32x256xf32>
    %cst_40 = arith.constant 0.000000e+00 : f32
    %77 = vector.broadcast %cst_40 : f32 to vector<32x256xf32>
    %78 = arith.select %24, %76, %77 : vector<32x256xi1>, vector<32x256xf32>
    %c7 = arith.constant 7 : index
    %c0_41 = arith.constant 0 : index
    %c0_42 = arith.constant 0 : index
    %79 = vector.load %arg2[%c7, %c0_41, %c0_42] : memref<9x32x32xf32, #tpu.memory_space<vmem>>, vector<1x32x32xf32>
    %80 = vector.shape_cast %79 : vector<1x32x32xf32> to vector<32x32xf32>
    %cst_43 = arith.constant dense<0.000000e+00> : vector<32x256xf32>
    %81 = tpu.matmul %80, %78, %cst_43 {dimension_numbers = #tpu.dot_dimension_numbers<[1], [0], [0], [1], [0, 0, 1, 1], [], []>} : vector<32x32xf32>, vector<32x256xf32>, vector<32x256xf32> -> vector<32x256xf32>
    %82 = arith.addf %75, %81 : vector<32x256xf32>
    %c239_i32 = arith.constant 239 : i32
    %83 = tpu.dynamic_rotate %27 by %c239_i32 dim 1 : vector<32x256xf32>, i32 -> vector<32x256xf32>
    %84 = arith.andi %24, %20 : vector<32x256xi1>
    %cst_44 = arith.constant 0.000000e+00 : f32
    %85 = vector.broadcast %cst_44 : f32 to vector<32x256xf32>
    %86 = arith.select %84, %83, %85 : vector<32x256xi1>, vector<32x256xf32>
    %c8 = arith.constant 8 : index
    %c0_45 = arith.constant 0 : index
    %c0_46 = arith.constant 0 : index
    %87 = vector.load %arg2[%c8, %c0_45, %c0_46] : memref<9x32x32xf32, #tpu.memory_space<vmem>>, vector<1x32x32xf32>
    %88 = vector.shape_cast %87 : vector<1x32x32xf32> to vector<32x32xf32>
    %cst_47 = arith.constant dense<0.000000e+00> : vector<32x256xf32>
    %89 = tpu.matmul %88, %86, %cst_47 {dimension_numbers = #tpu.dot_dimension_numbers<[1], [0], [0], [1], [0, 0, 1, 1], [], []>} : vector<32x32xf32>, vector<32x256xf32>, vector<32x256xf32> -> vector<32x256xf32>
    %90 = arith.addf %82, %89 : vector<32x256xf32>
    %91 = arith.addf %90, %27 : vector<32x256xf32>
    %92 = vector.broadcast %25 : vector<32x1xf32> to vector<32x256xf32>
    %93 = arith.addf %91, %92 : vector<32x256xf32>
    %cst_48 = arith.constant 5.000000e-01 : f32
    %94 = vector.broadcast %cst_48 : f32 to vector<32x256xf32>
    %95 = arith.mulf %94, %93 : vector<32x256xf32>
    %cst_49 = arith.constant 0.707106769 : f32
    %96 = vector.broadcast %cst_49 : f32 to vector<32x256xf32>
    %97 = arith.mulf %93, %96 : vector<32x256xf32>
    %98 = math.absf %97 : vector<32x256xf32>
    %cst_50 = arith.constant 0.327591091 : f32
    %99 = vector.broadcast %cst_50 : f32 to vector<32x256xf32>
    %100 = arith.mulf %99, %98 : vector<32x256xf32>
    %cst_51 = arith.constant 1.000000e+00 : f32
    %101 = vector.broadcast %cst_51 : f32 to vector<32x256xf32>
    %102 = arith.addf %101, %100 : vector<32x256xf32>
    %cst_52 = arith.constant 1.000000e+00 : f32
    %103 = vector.broadcast %cst_52 : f32 to vector<32x256xf32>
    %104 = arith.divf %103, %102 : vector<32x256xf32>
    %cst_53 = arith.constant 1.06140542 : f32
    %105 = vector.broadcast %cst_53 : f32 to vector<32x256xf32>
    %106 = arith.mulf %105, %104 : vector<32x256xf32>
    %cst_54 = arith.constant -1.45315206 : f32
    %107 = vector.broadcast %cst_54 : f32 to vector<32x256xf32>
    %108 = arith.addf %106, %107 : vector<32x256xf32>
    %109 = arith.mulf %108, %104 : vector<32x256xf32>
    %cst_55 = arith.constant 1.42141378 : f32
    %110 = vector.broadcast %cst_55 : f32 to vector<32x256xf32>
    %111 = arith.addf %109, %110 : vector<32x256xf32>
    %112 = arith.mulf %111, %104 : vector<32x256xf32>
    %cst_56 = arith.constant -0.284496725 : f32
    %113 = vector.broadcast %cst_56 : f32 to vector<32x256xf32>
    %114 = arith.addf %112, %113 : vector<32x256xf32>
    %115 = arith.mulf %114, %104 : vector<32x256xf32>
    %cst_57 = arith.constant 0.254829586 : f32
    %116 = vector.broadcast %cst_57 : f32 to vector<32x256xf32>
    %117 = arith.addf %115, %116 : vector<32x256xf32>
    %118 = arith.mulf %117, %104 : vector<32x256xf32>
    %119 = arith.mulf %98, %98 : vector<32x256xf32>
    %cst_58 = arith.constant 0.000000e+00 : f32
    %120 = vector.broadcast %cst_58 : f32 to vector<32x256xf32>
    %121 = arith.subf %120, %119 : vector<32x256xf32>
    %122 = math.exp %121 : vector<32x256xf32>
    %123 = arith.mulf %118, %122 : vector<32x256xf32>
    %cst_59 = arith.constant 1.000000e+00 : f32
    %124 = vector.broadcast %cst_59 : f32 to vector<32x256xf32>
    %125 = arith.subf %124, %123 : vector<32x256xf32>
    %cst_60 = arith.constant 0.000000e+00 : f32
    %126 = vector.broadcast %cst_60 : f32 to vector<32x256xf32>
    %127 = arith.cmpf oge, %97, %126 : vector<32x256xf32>
    %cst_61 = arith.constant 0.000000e+00 : f32
    %128 = vector.broadcast %cst_61 : f32 to vector<32x256xf32>
    %129 = arith.subf %128, %125 : vector<32x256xf32>
    %130 = arith.select %127, %125, %129 : vector<32x256xi1>, vector<32x256xf32>
    %cst_62 = arith.constant 1.000000e+00 : f32
    %131 = vector.broadcast %cst_62 : f32 to vector<32x256xf32>
    %132 = arith.addf %131, %130 : vector<32x256xf32>
    %133 = arith.mulf %95, %132 : vector<32x256xf32>
    %c0_63 = arith.constant 0 : index
    %c0_64 = arith.constant 0 : index
    %c0_65 = arith.constant 0 : index
    %134 = vector.load %arg4[%c0_63, %c0_64, %c0_65] : memref<1x32x256xf32, #tpu.memory_space<vmem>>, vector<1x32x256xf32>
    %135 = vector.shape_cast %134 : vector<1x32x256xf32> to vector<32x256xf32>
    %136 = vector.shape_cast %133 : vector<32x256xf32> to vector<1x32x256xf32>
    tpu.vector_store %arg4[%c0_63, %c0_64, %c0_65], %136 {strides = array<i32>} : memref<1x32x256xf32, #tpu.memory_space<vmem>>, vector<1x32x256xf32>,
    return
  }
  func.func @transform_0(%arg0: i32) -> (i32, i32, i32) {
    %c0_i32 = arith.constant 0 : i32
    %c0_i32_0 = arith.constant 0 : i32
    %c0_i32_1 = arith.constant 0 : i32
    return %arg0, %c0_i32, %c0_i32_0 : i32, i32, i32
  }
  func.func @transform_1(%arg0: i32) -> (i32, i32, i32) {
    %c0_i32 = arith.constant 0 : i32
    %c0_i32_0 = arith.constant 0 : i32
    %c0_i32_1 = arith.constant 0 : i32
    %c0_i32_2 = arith.constant 0 : i32
    return %c0_i32, %c0_i32_0, %c0_i32_1 : i32, i32, i32
  }
  func.func @transform_2(%arg0: i32) -> (i32, i32) {
    %c0_i32 = arith.constant 0 : i32
    %c0_i32_0 = arith.constant 0 : i32
    %c0_i32_1 = arith.constant 0 : i32
    return %c0_i32, %c0_i32_0 : i32, i32
  }
  func.func @transform_3(%arg0: i32) -> (i32, i32, i32) {
    %c0_i32 = arith.constant 0 : i32
    %c0_i32_0 = arith.constant 0 : i32
    %c0_i32_1 = arith.constant 0 : i32
    return %arg0, %c0_i32, %c0_i32_0 : i32, i32, i32
  }
}

</mosaic_0001>

<llo_original>
// kernel: _rfdb_call.1
$region0: #{_rfdb_call.1}
  #allocation0 [shape = 'u32[]', space=smem, size = 0x4, offset = 0x4, fixed_abs, tag = 'smem constant byte address 0x4 - core index']
  #allocation1 [shape = 'u32[144,128]{1,0:T(1,128)}', space=vmem, size = 0x12000, scoped, tag = 'internal scratch']
  %s0 = inlined_call_operand.vmem [shape: f32[2,32,256], index: 0, kind: input, shape index: {}]
  %s1 = inlined_call_operand.vmem [shape: f32[9,32,32], index: 1, kind: input, shape index: {}]
  %s2 = inlined_call_operand.vmem [shape: f32[32,1], index: 2, kind: input, shape index: {}]
  %s3 = inlined_call_operand.vmem [shape: f32[2,32,256], index: 3, kind: output, shape index: {}]
  %s4 = sld [smem:[#allocation0]]
  $region45: #{_rfdb_call.1} parent=0
    _
  %s6 = ssub.s32 1, %s4
  %s7 = scalar_select 0, %s6, %s4
  loop: start=0, step=1, limit=4
  $region2: #{_rfdb_call.1} parent=0 // loop_pre_header
    _
  $region3: #{_rfdb_call.1} parent=0 // loop_header
    %s9 = sphi 0, %s13
    %p10 = scmp.ge.s32.totalorder %s9, 4
    %s19 = sphi 0, %s21
    %s22 = sphi 0, %s19
    %s23 = sphi 0, %s22
    %s39 = sphi 0, %s23
    %s43 = sphi 0, %s43
    %s45 = sphi 0, %s43
    %s46 = sphi 0, %s45
    %s60 = sphi 0, %s46
    %s64 = sphi 0, %s64
    %s66 = sphi 0, %s64
    %s67 = sphi 0, %s66
    %s81 = sphi 0, %s67
    %s87 = sphi 0, %s89
    %s90 = sphi 0, %s87
    %s91 = sphi 0, %s90
    %s107 = sphi 0, %s91
  $region4: #{_rfdb_call.1} parent=0 // loop_header_branch
    %12 = sbr.rel (%p10) target = $region8
  $region5: #{_rfdb_call.1} parent=0 // loop_body
    %s14 = ssub.s32 %s9, 1
    %s15 = ssub.s32 %s9, 2
    %s16 = sadd.s32 %s9, 1
    %s17 = ssub.s32 %s9, %s16
    %p18 = scmp.eq.s32.totalorder %s17, 0
    %s20 = sadd.s32 %s19, 1
    %s21 = scalar_select %p18, %s19, %s20
    %p24 = pneg %p18
    %p25 = scmp.eq.s32.totalorder %s9, 1
    %p26 = por %p24, %p25
    %p27 = scmp.ne.s32.totalorder %s19, %s22
    %p28 = scmp.eq.s32.totalorder %s9, 0
    %p29 = por %p27, %p28
    %p30 = scmp.ne.s32.totalorder %s19, %s22
    %p31 = scmp.eq.s32.totalorder %s14, 1
    %p32 = por %p30, %p31
    %p33 = scmp.ne.s32.totalorder %s22, %s23
    %p34 = scmp.eq.s32.totalorder %s14, 0
    %p35 = por %p33, %p34
    %p36 = scmp.ne.s32.totalorder %s22, %s23
    %p37 = scmp.eq.s32.totalorder %s15, 1
    %p38 = por %p36, %p37
    %p40 = scmp.ne.s32.totalorder %s23, %s39
    %p41 = scmp.eq.s32.totalorder %s15, 0
    %p42 = por %p40, %p41
    %s44 = sadd.s32 %s43, 1
    %p47 = scmp.eq.s32.totalorder %s9, 1
    %p48 = scmp.ne.s32.totalorder %s43, %s45
    %p49 = scmp.eq.s32.totalorder %s9, 0
    %p50 = por %p48, %p49
    %p51 = scmp.ne.s32.totalorder %s43, %s45
    %p52 = scmp.eq.s32.totalorder %s14, 1
    %p53 = por %p51, %p52
    %p54 = scmp.ne.s32.totalorder %s45, %s46
    %p55 = scmp.eq.s32.totalorder %s14, 0
    %p56 = por %p54, %p55
    %p57 = scmp.ne.s32.totalorder %s45, %s46
    %p58 = scmp.eq.s32.totalorder %s15, 1
    %p59 = por %p57, %p58
    %p61 = scmp.ne.s32.totalorder %s46, %s60
    %p62 = scmp.eq.s32.totalorder %s15, 0
    %p63 = por %p61, %p62
    %s65 = sadd.s32 %s64, 1
    %p68 = scmp.eq.s32.totalorder %s9, 1
    %p69 = scmp.ne.s32.totalorder %s64, %s66
    %p70 = scmp.eq.s32.totalorder %s9, 0
    %p71 = por %p69, %p70
    %p72 = scmp.ne.s32.totalorder %s64, %s66
    %p73 = scmp.eq.s32.totalorder %s14, 1
    %p74 = por %p72, %p73
    %p75 = scmp.ne.s32.totalorder %s66, %s67
    %p76 = scmp.eq.s32.totalorder %s14, 0
    %p77 = por %p75, %p76
    %p78 = scmp.ne.s32.totalorder %s66, %s67
    %p79 = scmp.eq.s32.totalorder %s15, 1
    %p80 = por %p78, %p79
    %p82 = scmp.ne.s32.totalorder %s67, %s81
    %p83 = scmp.eq.s32.totalorder %s15, 0
    %p84 = por %p82, %p83
    %s85 = ssub.s32 %s9, %s16
    %p86 = scmp.eq.s32.totalorder %s85, 0
    %s88 = sadd.s32 %s87, 1
    %s89 = scalar_select %p86, %s87, %s88
    %p92 = pneg %p86
    %p93 = scmp.eq.s32.totalorder %s9, 1
    %p94 = por %p92, %p93
    %p95 = scmp.ne.s32.totalorder %s87, %s90
    %p96 = scmp.eq.s32.totalorder %s9, 0
    %p97 = por %p95, %p96
    %p98 = scmp.ne.s32.totalorder %s87, %s90
    %p99 = scmp.eq.s32.totalorder %s14, 1
    %p100 = por %p98, %p99
    %p101 = scmp.ne.s32.totalorder %s90, %s91
    %p102 = scmp.eq.s32.totalorder %s14, 0
    %p103 = por %p101, %p102
    %p104 = scmp.ne.s32.totalorder %s90, %s91
    %p105 = scmp.eq.s32.totalorder %s15, 1
    %p106 = por %p104, %p105
    %p108 = scmp.ne.s32.totalorder %s91, %s107
    %p109 = scmp.eq.s32.totalorder %s15, 0
    %p110 = por %p108, %p109
    %p111 = scmp.le.s32.totalorder 1, %s9
    %p112 = scmp.lt.s32.totalorder %s9, 3
    %p113 = pnand %p111, %p112
    %p114 = pneg %p113
    // Predicated region
    $region9: #{_rfdb_call.1} parent=5 // pred_check
      _
    $region10: #{_rfdb_call.1} parent=5 // pred_check_branch
      %116 = sbr.rel (%p113) target = $region12
    $region11: #{_rfdb_call.1} parent=5 // pred_region
      %s117 = ssub.s32 %s9, 1
      // Predicated region
      $region13: #{_rfdb_call.1} parent=11 // pred_check
        %p118 = pneg %p56
      $region14: #{_rfdb_call.1} parent=11 // pred_check_branch
        %120 = sbr.rel (%p118) target = $region16
      $region15: #{_rfdb_call.1} parent=11 // pred_region
        _
      $region16: #{_rfdb_call.1} parent=11 // pred_fallthru
        _
      // Predicated region
      $region17: #{_rfdb_call.1} parent=11 // pred_check
        %p121 = pneg %p77
      $region18: #{_rfdb_call.1} parent=11 // pred_check_branch
        %123 = sbr.rel (%p121) target = $region20
      $region19: #{_rfdb_call.1} parent=11 // pred_region
        _
      $region20: #{_rfdb_call.1} parent=11 // pred_fallthru
        _
    $region12: #{_rfdb_call.1} parent=5 // pred_fallthru
      _
    %p124 = scmp.lt.s32.totalorder %s9, 2
    // Predicated region
    $region21: #{_rfdb_call.1} parent=5 // pred_check
      %p125 = pneg %p124
    $region22: #{_rfdb_call.1} parent=5 // pred_check_branch
      %127 = sbr.rel (%p125) target = $region24
    $region23: #{_rfdb_call.1} parent=5 // pred_region
      // Predicated region
      $region25: #{_rfdb_call.1} parent=23 // pred_check
        %p128 = pneg %p29
      $region26: #{_rfdb_call.1} parent=23 // pred_check_branch
        %130 = sbr.rel (%p128) target = $region28
      $region27: #{_rfdb_call.1} parent=23 // pred_region
        %p131 = scmp.lt.s32.totalorder %s9, 1
        %s132 = scalar_select %p131, %s9, 1
        %s133 = smul.addr %s132, 8
        %s134 = smul.addr %s133, 8
        %s135 = scalar_lea.vmem %s0, %s134
      $region28: #{_rfdb_call.1} parent=23 // pred_fallthru
        _
    $region24: #{_rfdb_call.1} parent=5 // pred_fallthru
      _
    %p136 = scmp.le.s32.totalorder 1, %s9
    %p137 = scmp.lt.s32.totalorder %s9, 3
    %p138 = pnand %p136, %p137
    %p139 = pneg %p138
    // Predicated region
    $region29: #{_rfdb_call.1} parent=5 // pred_check
      _
    $region30: #{_rfdb_call.1} parent=5 // pred_check_branch
      %141 = sbr.rel (%p138) target = $region32
    $region31: #{_rfdb_call.1} parent=5 // pred_region
      %s142 = ssub.s32 %s9, 1
      %p143 = scmp.lt.s32.totalorder %s14, 1
      %s144 = scalar_select %p143, %s14, 1
      %s145 = smul.addr %s144, 8
      %s146 = smul.addr %s145, 8
      %s147 = scalar_lea.vmem %s0, %s146
      %p148 = pneg %p35
      %p149 = pneg %p32
      %p150 = pneg %p56
      %p151 = pneg %p53
      %p152 = pneg %p77
      %p153 = pneg %p74
      %p154 = pneg %p103
      %p155 = pneg %p100
      %p156 = scmp.lt.s32.totalorder %s14, 1
      %s157 = scalar_select %p156, %s14, 1
      %s158 = smul.addr %s157, 8
      %s159 = smul.addr %s158, 8
      %s160 = scalar_lea.vmem %s3, %s159
      %p161 = scmp.lt.s32.totalorder %s14, 1
      %s162 = scalar_select %p161, %s14, 1
      %s163 = smul.addr %s162, 8
      %s164 = smul.addr %s163, 8
      %s165 = scalar_lea.vmem %s0, %s164
      %p166 = scmp.lt.s32.totalorder %s14, 1
      %s167 = scalar_select %p166, %s14, 1
      %s168 = smul.addr %s167, 8
      %s169 = smul.addr %s168, 8
      %s170 = scalar_lea.vmem %s3, %s169
      %v171 = vlaneseq
      %v172 = vand.u32 %v171, 127
      %v173 = vadd.s32 %v172, 128
      %vm174 = vcmp.lt.s32.totalorder %v172, 0
      %v175 = vsub.s32 0, %v172
      %v176 = vsel %vm174, %v175, %v172
      %v177 = vshrl.u32 %v176, 4
      %v178 = vand.u32 %v176, 15
      %v179 = vsub.s32 0, %v178
      %v180 = vsel %vm174, %v179, %v178
      %vm181 = vcmp.lt.s32.totalorder %v173, 0
      %v182 = vsub.s32 0, %v173
      %v183 = vsel %vm181, %v182, %v173
      %v184 = vshrl.u32 %v183, 4
      %v185 = vand.u32 %v183, 15
      %v186 = vsub.s32 0, %v185
      %v187 = vsel %vm181, %v186, %v185
      %vm188 = vcmp.ne.s32.totalorder %v180, 0
      %vm189 = vcmp.ne.s32.totalorder %v187, 0
      %vm190 = vcmp.lt.s32.totalorder %v180, 0
      %vm191 = vcmp.lt.s32.totalorder %v187, 0
      %vm192 = vmand %vm190, %vm188
      %vm193 = vmand %vm191, %vm189
      %v194 = vadd.s32 %v180, 16
      %v195 = vadd.s32 %v187, 16
      %v196 = vsel %vm192, %v194, %v180
      %v197 = vsel %vm193, %v195, %v187
      %vm198 = vcmp.ne.s32.totalorder %v196, 0
      %vm199 = vcmp.ne.s32.totalorder %v197, 0
      %vm200 = vcmp.ne.s32.totalorder %v196, 15
      %vm201 = vcmp.ne.s32.totalorder %v197, 15
      %vm202 = vcmp.ge.s32.totalorder %v172, 16
      %vm203 = vcmp.ge.s32.totalorder %v173, 16
      %vm204 = vcmp.lt.s32.totalorder %v172, 240
      %vm205 = vcmp.lt.s32.totalorder %v173, 240
      %v206 = vld [vmem:[%s2] sm:$0xff]
      %v207 = vld [vmem:[%s2 + $0x8] sm:$0xff]
      %v208 = vld [vmem:[%s2 + $0x10] sm:$0xff]
      %v209 = vld [vmem:[%s2 + $0x18] sm:$0xff]
      %v210 = vld [vmem:[%s165] sm:$0xff]
      %v211 = vld [vmem:[%s165 + $0x8] sm:$0xff]
      %v212 = vld [vmem:[%s165 + $0x10] sm:$0xff]
      %v213 = vld [vmem:[%s165 + $0x18] sm:$0xff]
      %v214 = vld [vmem:[%s165 + $0x20] sm:$0xff]
      %v215 = vld [vmem:[%s165 + $0x28] sm:$0xff]
      %v216 = vld [vmem:[%s165 + $0x30] sm:$0xff]
      %v217 = vld [vmem:[%s165 + $0x38] sm:$0xff]
      %218 = vrot.lane.b32.xlu0 %v210, 17
      %v219 = vpop.permute.xlu0 %218
      %220 = vrot.lane.b32.xlu0 %v212, 17
      %v221 = vpop.permute.xlu0 %220
      %222 = vrot.lane.b32.xlu0 %v214, 17
      %v223 = vpop.permute.xlu0 %222
      %224 = vrot.lane.b32.xlu0 %v216, 17
      %v225 = vpop.permute.xlu0 %224
      %226 = vrot.lane.b32.xlu0 %v211, 17
      %v227 = vpop.permute.xlu0 %226
      %228 = vrot.lane.b32.xlu0 %v213, 17
      %v229 = vpop.permute.xlu0 %228
      %230 = vrot.lane.b32.xlu0 %v215, 17
      %v231 = vpop.permute.xlu0 %230
      %232 = vrot.lane.b32.xlu0 %v217, 17
      %v233 = vpop.permute.xlu0 %232
      %vm234 = vcmp.lt.s32.totalorder %v172, 17
      %v235 = vsel %vm234, %v219, %v227
      %v236 = vsel %vm234, %v221, %v229
      %v237 = vsel %vm234, %v223, %v231
      %v238 = vsel %vm234, %v225, %v233
      %v239 = vsel %vm234, %v227, %v219
      %v240 = vsel %vm234, %v229, %v221
      %v241 = vsel %vm234, %v231, %v223
      %v242 = vsel %vm234, %v233, %v225
      %vm243 = vmand %vm202, %vm198
      %vm244 = vmand %vm203, %vm199
      %v245 = vsel %vm243, %v239, 0.0
      %v246 = vsel %vm244, %v235, 0.0
      %v247 = vsel %vm243, %v240, 0.0
      %v248 = vsel %vm244, %v236, 0.0
      %v249 = vsel %vm243, %v241, 0.0
      %v250 = vsel %vm244, %v237, 0.0
      %v251 = vsel %vm243, %v242, 0.0
      %v252 = vsel %vm244, %v238, 0.0
      %v253 = vld [vmem:[%s1] sm:$0xff]
      %v254 = vld [vmem:[%s1 + $0x8] sm:$0xff]
      %v255 = vld [vmem:[%s1 + $0x10] sm:$0xff]
      %v256 = vld [vmem:[%s1 + $0x18] sm:$0xff]
      %257 = vrot.lane.b32.xlu0 %v210, 16
      %v258 = vpop.permute.xlu0 %257
      %259 = vrot.lane.b32.xlu0 %v212, 16
      %v260 = vpop.permute.xlu0 %259
      %261 = vrot.lane.b32.xlu0 %v214, 16
      %v262 = vpop.permute.xlu0 %261
      %263 = vrot.lane.b32.xlu0 %v216, 16
      %v264 = vpop.permute.xlu0 %263
      %265 = vrot.lane.b32.xlu0 %v211, 16
      %v266 = vpop.permute.xlu0 %265
      %267 = vrot.lane.b32.xlu0 %v213, 16
      %v268 = vpop.permute.xlu0 %267
      %269 = vrot.lane.b32.xlu0 %v215, 16
      %v270 = vpop.permute.xlu0 %269
      %271 = vrot.lane.b32.xlu0 %v217, 16
      %v272 = vpop.permute.xlu0 %271
      %vm273 = vcmp.lt.s32.totalorder %v172, 16
      %v274 = vsel %vm273, %v258, %v266
      %v275 = vsel %vm273, %v260, %v268
      %v276 = vsel %vm273, %v262, %v270
      %v277 = vsel %vm273, %v264, %v272
      %v278 = vsel %vm273, %v266, %v258
      %v279 = vsel %vm273, %v268, %v260
      %v280 = vsel %vm273, %v270, %v262
      %v281 = vsel %vm273, %v272, %v264
      %v282 = vsel %vm202, %v278, 0.0
      %v283 = vsel %vm203, %v274, 0.0
      %v284 = vsel %vm202, %v279, 0.0
      %v285 = vsel %vm203, %v275, 0.0
      %v286 = vsel %vm202, %v280, 0.0
      %v287 = vsel %vm203, %v276, 0.0
      %v288 = vsel %vm202, %v281, 0.0
      %v289 = vsel %vm203, %v277, 0.0
      %s290 = scalar_lea.vmem %s1, 32
      %v291 = vld [vmem:[%s290] sm:$0xff]
      %v292 = vld [vmem:[%s290 + $0x8] sm:$0xff]
      %v293 = vld [vmem:[%s290 + $0x10] sm:$0xff]
      %v294 = vld [vmem:[%s290 + $0x18] sm:$0xff]
      %vm295 = vcmask 261120
      %v297 = vsel %vm295, %v291, 0
      %v300 = vsel %vm295, %v292, 0
      %v303 = vsel %vm295, %v293, 0
      %v306 = vsel %vm295, %v294, 0
      %308 = vmatprep.subr.mxu0 %v283
      %309 = vmatpush1.msra.mxu0 %v282
      %310 = vmatprep.subr.mxu0 %v285
      %311 = vmatpush1.msra.mxu0 %v284
      %312 = vmatprep.subr.mxu0 %v287
      %313 = vmatpush1.msra.mxu0 %v286
      %314 = vmatprep.subr.mxu0 %v289
      %315 = vmatpush1.msra.mxu0 %v288
      %316 = vmatprep.subr.mxu0 0.0
      %317 = vmatpush1.msra.mxu0 0.0
      %318 = vmatprep.subr.mxu0 0.0
      %319 = vmatpush1.msra.mxu0 0.0
      %320 = vmatprep.subr.mxu0 0.0
      %321 = vmatpush1.msra.mxu0 0.0
      %322 = vmatprep.subr.mxu0 0.0
      %323 = vmatpush1.msra.mxu0 0.0
      %324 = vmatprep.subr.mxu0 0.0
      %325 = vmatpush1.msra.mxu0 0.0
      %326 = vmatprep.subr.mxu0 0.0
      %327 = vmatpush1.msra.mxu0 0.0
      %328 = vmatprep.subr.mxu0 0.0
      %329 = vmatpush1.msra.mxu0 0.0
      %330 = vmatprep.subr.mxu0 0.0
      %331 = vmatpush1.msra.mxu0 0.0
      %332 = vmatprep.subr.mxu0 0.0
      %333 = vmatpush1.msra.mxu0 0.0
      %334 = vmatprep.subr.mxu0 0.0
      %335 = vmatpush1.msra.mxu0 0.0
      %336 = vmatprep.subr.mxu0 0.0
      %337 = vmatpush1.msra.mxu0 0.0
      %338 = vmatprep.subr.mxu0 0.0
      %339 = vmatpush1.msra.mxu0 0.0
      %340 = vmatprep.subr.mxu0 0.0
      %341 = vmatpush1.msra.mxu0 0.0
      %342 = vmatprep.subr.mxu0 0.0
      %343 = vmatpush1.msra.mxu0 0.0
      %344 = vmatprep.subr.mxu0 0.0
      %345 = vmatpush1.msra.mxu0 0.0
      %346 = vmatprep.subr.mxu0 0.0
      %347 = vmatpush1.msra.mxu0 0.0
      %348 = vmatprep.subr.mxu0 0.0
      %349 = vmatpush1.msra.mxu0 0.0
      %350 = vmatprep.subr.mxu0 0.0
      %351 = vmatpush1.msra.mxu0 0.0
      %352 = vmatprep.subr.mxu0 0.0
      %353 = vmatpush1.msra.mxu0 0.0
      %354 = vmatprep.subr.mxu0 0.0
      %355 = vmatpush1.msra.mxu0 0.0
      %356 = vmatprep.subr.mxu0 0.0
      %357 = vmatpush1.msra.mxu0 0.0
      %358 = vmatprep.subr.mxu0 0.0
      %359 = vmatpush1.msra.mxu0 0.0
      %360 = vmatprep.subr.mxu0 0.0
      %361 = vmatpush1.msra.mxu0 0.0
      %362 = vmatprep.subr.mxu0 0.0
      %363 = vmatpush1.msra.mxu0 0.0
      %364 = vmatprep.subr.mxu0 0.0
      %365 = vmatpush1.msra.mxu0 0.0
      %366 = vmatprep.subr.mxu0 0.0
      %367 = vmatpush1.msra.mxu0 0.0
      %368 = vmatprep.subr.mxu0 0.0
      %369 = vmatpush1.msra.mxu0 0.0
      %370 = vmatprep.subr.mxu0 0.0
      %371 = vmatpush1.msra.mxu0 0.0
      %372 = vmatprep.mubr.f32.mxu0 0.0
      %373 = vmatmul.mubr.f32.gmra.mrb[0].mxu0 %v297
      %v374 = vpop.f32.mrb[0].mxu0
      %v375 = vadd.f32 0.0, %v374
      %v376 = vpop.f32.mrb[0].mxu0
      %v377 = vadd.f32 0.0, %v376
      %378 = vmatprep.mubr.f32.mxu0 0.0
      %379 = vmatmul.mubr.f32.gmra.mrb[0].mxu0 %v300
      %v380 = vpop.f32.mrb[0].mxu0
      %v381 = vadd.f32 0.0, %v380
      %v382 = vpop.f32.mrb[0].mxu0
      %v383 = vadd.f32 0.0, %v382
      %384 = vmatprep.mubr.f32.mxu0 0.0
      %385 = vmatmul.mubr.f32.gmra.mrb[0].mxu0 %v303
      %v386 = vpop.f32.mrb[0].mxu0
      %v387 = vadd.f32 0.0, %v386
      %v388 = vpop.f32.mrb[0].mxu0
      %v389 = vadd.f32 0.0, %v388
      %390 = vmatprep.mubr.f32.mxu0 0.0
      %391 = vmatmul.mubr.f32.gmra.mrb[0].mxu0 %v306
      %v392 = vpop.f32.mrb[0].mxu0
      %v393 = vadd.f32 0.0, %v392
      %v394 = vpop.f32.mrb[0].mxu0
      %v395 = vadd.f32 0.0, %v394
      %396 = vdwg.mxu0
      %v398 = vsel %vm295, %v253, 0
      %v401 = vsel %vm295, %v254, 0
      %v404 = vsel %vm295, %v255, 0
      %v407 = vsel %vm295, %v256, 0
      %409 = vmatprep.subr.mxu0 %v246
      %410 = vmatpush1.msra.mxu0 %v245
      %411 = vmatprep.subr.mxu0 %v248
      %412 = vmatpush1.msra.mxu0 %v247
      %413 = vmatprep.subr.mxu0 %v250
      %414 = vmatpush1.msra.mxu0 %v249
      %415 = vmatprep.subr.mxu0 %v252
      %416 = vmatpush1.msra.mxu0 %v251
      %417 = vmatprep.subr.mxu0 0.0
      %418 = vmatpush1.msra.mxu0 0.0
      %419 = vmatprep.subr.mxu0 0.0
      %420 = vmatpush1.msra.mxu0 0.0
      %421 = vmatprep.subr.mxu0 0.0
      %422 = vmatpush1.msra.mxu0 0.0
      %423 = vmatprep.subr.mxu0 0.0
      %424 = vmatpush1.msra.mxu0 0.0
      %425 = vmatprep.subr.mxu0 0.0
      %426 = vmatpush1.msra.mxu0 0.0
      %427 = vmatprep.subr.mxu0 0.0
      %428 = vmatpush1.msra.mxu0 0.0
      %429 = vmatprep.subr.mxu0 0.0
      %430 = vmatpush1.msra.mxu0 0.0
      %431 = vmatprep.subr.mxu0 0.0
      %432 = vmatpush1.msra.mxu0 0.0
      %433 = vmatprep.subr.mxu0 0.0
      %434 = vmatpush1.msra.mxu0 0.0
      %435 = vmatprep.subr.mxu0 0.0
      %436 = vmatpush1.msra.mxu0 0.0
      %437 = vmatprep.subr.mxu0 0.0
      %438 = vmatpush1.msra.mxu0 0.0
      %439 = vmatprep.subr.mxu0 0.0
      %440 = vmatpush1.msra.mxu0 0.0
      %441 = vmatprep.subr.mxu0 0.0
      %442 = vmatpush1.msra.mxu0 0.0
      %443 = vmatprep.subr.mxu0 0.0
      %444 = vmatpush1.msra.mxu0 0.0
      %445 = vmatprep.subr.mxu0 0.0
      %446 = vmatpush1.msra.mxu0 0.0
      %447 = vmatprep.subr.mxu0 0.0
      %448 = vmatpush1.msra.mxu0 0.0
      %449 = vmatprep.subr.mxu0 0.0
      %450 = vmatpush1.msra.mxu0 0.0
      %451 = vmatprep.subr.mxu0 0.0
      %452 = vmatpush1.msra.mxu0 0.0
      %453 = vmatprep.subr.mxu0 0.0
      %454 = vmatpush1.msra.mxu0 0.0
      %455 = vmatprep.subr.mxu0 0.0
      %456 = vmatpush1.msra.mxu0 0.0
      %457 = vmatprep.subr.mxu0 0.0
      %458 = vmatpush1.msra.mxu0 0.0
      %459 = vmatprep.subr.mxu0 0.0
      %460 = vmatpush1.msra.mxu0 0.0
      %461 = vmatprep.subr.mxu0 0.0
      %462 = vmatpush1.msra.mxu0 0.0
      %463 = vmatprep.subr.mxu0 0.0
      %464 = vmatpush1.msra.mxu0 0.0
      %465 = vmatprep.subr.mxu0 0.0
      %466 = vmatpush1.msra.mxu0 0.0
      %467 = vmatprep.subr.mxu0 0.0
      %468 = vmatpush1.msra.mxu0 0.0
      %469 = vmatprep.subr.mxu0 0.0
      %470 = vmatpush1.msra.mxu0 0.0
      %471 = vmatprep.subr.mxu0 0.0
      %472 = vmatpush1.msra.mxu0 0.0
      %473 = vmatprep.mubr.f32.mxu0 0.0
      %474 = vmatmul.mubr.f32.gmra.mrb[0].mxu0 %v398
      %v475 = vpop.f32.mrb[0].mxu0
      %v476 = vadd.f32 %v375, %v475
      %v477 = vpop.f32.mrb[0].mxu0
      %v478 = vadd.f32 %v377, %v477
      %479 = vmatprep.mubr.f32.mxu0 0.0
      %480 = vmatmul.mubr.f32.gmra.mrb[0].mxu0 %v401
      %v481 = vpop.f32.mrb[0].mxu0
      %v482 = vadd.f32 %v381, %v481
      %v483 = vpop.f32.mrb[0].mxu0
      %v484 = vadd.f32 %v383, %v483
      %485 = vmatprep.mubr.f32.mxu0 0.0
      %486 = vmatmul.mubr.f32.gmra.mrb[0].mxu0 %v404
      %v487 = vpop.f32.mrb[0].mxu0
      %v488 = vadd.f32 %v387, %v487
      %v489 = vpop.f32.mrb[0].mxu0
      %v490 = vadd.f32 %v389, %v489
      %491 = vmatprep.mubr.f32.mxu0 0.0
      %492 = vmatmul.mubr.f32.gmra.mrb[0].mxu0 %v407
      %v493 = vpop.f32.mrb[0].mxu0
      %v494 = vadd.f32 %v393, %v493
      %v495 = vpop.f32.mrb[0].mxu0
      %v496 = vadd.f32 %v395, %v495
      %497 = vdwg.mxu0
      %498 = vrot.lane.b32.xlu0 %v210, 15
      %v499 = vpop.permute.xlu0 %498
      %500 = vrot.lane.b32.xlu0 %v212, 15
      %v501 = vpop.permute.xlu0 %500
      %502 = vrot.lane.b32.xlu0 %v214, 15
      %v503 = vpop.permute.xlu0 %502
      %504 = vrot.lane.b32.xlu0 %v216, 15
      %v505 = vpop.permute.xlu0 %504
      %506 = vrot.lane.b32.xlu0 %v211, 15
      %v507 = vpop.permute.xlu0 %506
      %508 = vrot.lane.b32.xlu0 %v213, 15
      %v509 = vpop.permute.xlu0 %508
      %510 = vrot.lane.b32.xlu0 %v215, 15
      %v511 = vpop.permute.xlu0 %510
      %512 = vrot.lane.b32.xlu0 %v217, 15
      %v513 = vpop.permute.xlu0 %512
      %vm514 = vcmp.lt.s32.totalorder %v172, 15
      %v515 = vsel %vm514, %v499, %v507
      %v516 = vsel %vm514, %v501, %v509
      %v517 = vsel %vm514, %v503, %v511
      %v518 = vsel %vm514, %v505, %v513
      %v519 = vsel %vm514, %v507, %v499
      %v520 = vsel %vm514, %v509, %v501
      %v521 = vsel %vm514, %v511, %v503
      %v522 = vsel %vm514, %v513, %v505
      %vm523 = vmand %vm202, %vm200
      %vm524 = vmand %vm203, %vm201
      %v525 = vsel %vm523, %v519, 0.0
      %v526 = vsel %vm524, %v515, 0.0
      %v527 = vsel %vm523, %v520, 0.0
      %v528 = vsel %vm524, %v516, 0.0
      %v529 = vsel %vm523, %v521, 0.0
      %v530 = vsel %vm524, %v517, 0.0
      %v531 = vsel %vm523, %v522, 0.0
      %v532 = vsel %vm524, %v518, 0.0
      %s533 = scalar_lea.vmem %s1, 64
      %v534 = vld [vmem:[%s533] sm:$0xff]
      %v535 = vld [vmem:[%s533 + $0x8] sm:$0xff]
      %v536 = vld [vmem:[%s533 + $0x10] sm:$0xff]
      %v537 = vld [vmem:[%s533 + $0x18] sm:$0xff]
      %v539 = vsel %vm295, %v534, 0
      %v542 = vsel %vm295, %v535, 0
      %v545 = vsel %vm295, %v536, 0
      %v548 = vsel %vm295, %v537, 0
      %550 = vmatprep.subr.mxu0 %v526
      %551 = vmatpush1.msra.mxu0 %v525
      %552 = vmatprep.subr.mxu0 %v528
      %553 = vmatpush1.msra.mxu0 %v527
      %554 = vmatprep.subr.mxu0 %v530
      %555 = vmatpush1.msra.mxu0 %v529
      %556 = vmatprep.subr.mxu0 %v532
      %557 = vmatpush1.msra.mxu0 %v531
      %558 = vmatprep.subr.mxu0 0.0
      %559 = vmatpush1.msra.mxu0 0.0
      %560 = vmatprep.subr.mxu0 0.0
      %561 = vmatpush1.msra.mxu0 0.0
      %562 = vmatprep.subr.mxu0 0.0
      %563 = vmatpush1.msra.mxu0 0.0
      %564 = vmatprep.subr.mxu0 0.0
      %565 = vmatpush1.msra.mxu0 0.0
      %566 = vmatprep.subr.mxu0 0.0
      %567 = vmatpush1.msra.mxu0 0.0
      %568 = vmatprep.subr.mxu0 0.0
      %569 = vmatpush1.msra.mxu0 0.0
      %570 = vmatprep.subr.mxu0 0.0
      %571 = vmatpush1.msra.mxu0 0.0
      %572 = vmatprep.subr.mxu0 0.0
      %573 = vmatpush1.msra.mxu0 0.0
      %574 = vmatprep.subr.mxu0 0.0
      %575 = vmatpush1.msra.mxu0 0.0
      %576 = vmatprep.subr.mxu0 0.0
      %577 = vmatpush1.msra.mxu0 0.0
      %578 = vmatprep.subr.mxu0 0.0
      %579 = vmatpush1.msra.mxu0 0.0
      %580 = vmatprep.subr.mxu0 0.0
      %581 = vmatpush1.msra.mxu0 0.0
      %582 = vmatprep.subr.mxu0 0.0
      %583 = vmatpush1.msra.mxu0 0.0
      %584 = vmatprep.subr.mxu0 0.0
      %585 = vmatpush1.msra.mxu0 0.0
      %586 = vmatprep.subr.mxu0 0.0
      %587 = vmatpush1.msra.mxu0 0.0
      %588 = vmatprep.subr.mxu0 0.0
      %589 = vmatpush1.msra.mxu0 0.0
      %590 = vmatprep.subr.mxu0 0.0
      %591 = vmatpush1.msra.mxu0 0.0
      %592 = vmatprep.subr.mxu0 0.0
      %593 = vmatpush1.msra.mxu0 0.0
      %594 = vmatprep.subr.mxu0 0.0
      %595 = vmatpush1.msra.mxu0 0.0
      %596 = vmatprep.subr.mxu0 0.0
      %597 = vmatpush1.msra.mxu0 0.0
      %598 = vmatprep.subr.mxu0 0.0
      %599 = vmatpush1.msra.mxu0 0.0
      %600 = vmatprep.subr.mxu0 0.0
      %601 = vmatpush1.msra.mxu0 0.0
      %602 = vmatprep.subr.mxu0 0.0
      %603 = vmatpush1.msra.mxu0 0.0
      %604 = vmatprep.subr.mxu0 0.0
      %605 = vmatpush1.msra.mxu0 0.0
      %606 = vmatprep.subr.mxu0 0.0
      %607 = vmatpush1.msra.mxu0 0.0
      %608 = vmatprep.subr.mxu0 0.0
      %609 = vmatpush1.msra.mxu0 0.0
      %610 = vmatprep.subr.mxu0 0.0
      %611 = vmatpush1.msra.mxu0 0.0
      %612 = vmatprep.subr.mxu0 0.0
      %613 = vmatpush1.msra.mxu0 0.0
      %614 = vmatprep.mubr.f32.mxu0 0.0
      %615 = vmatmul.mubr.f32.gmra.mrb[0].mxu0 %v539
      %v616 = vpop.f32.mrb[0].mxu0
      %v617 = vadd.f32 0.0, %v616
      %v618 = vpop.f32.mrb[0].mxu0
      %v619 = vadd.f32 0.0, %v618
      %620 = vmatprep.mubr.f32.mxu0 0.0
      %621 = vmatmul.mubr.f32.gmra.mrb[0].mxu0 %v542
      %v622 = vpop.f32.mrb[0].mxu0
      %v623 = vadd.f32 0.0, %v622
      %v624 = vpop.f32.mrb[0].mxu0
      %v625 = vadd.f32 0.0, %v624
      %626 = vmatprep.mubr.f32.mxu0 0.0
      %627 = vmatmul.mubr.f32.gmra.mrb[0].mxu0 %v545
      %v628 = vpop.f32.mrb[0].mxu0
      %v629 = vadd.f32 0.0, %v628
      %v630 = vpop.f32.mrb[0].mxu0
      %v631 = vadd.f32 0.0, %v630
      %632 = vmatprep.mubr.f32.mxu0 0.0
      %633 = vmatmul.mubr.f32.gmra.mrb[0].mxu0 %v548
      %v634 = vpop.f32.mrb[0].mxu0
      %v635 = vadd.f32 0.0, %v634
      %v636 = vpop.f32.mrb[0].mxu0
      %v637 = vadd.f32 0.0, %v636
      %638 = vdwg.mxu0
      %v639 = vadd.f32 %v476, %v617
      %v640 = vadd.f32 %v478, %v619
      %v641 = vadd.f32 %v482, %v623
      %v642 = vadd.f32 %v484, %v625
      %v643 = vadd.f32 %v488, %v629
      %v644 = vadd.f32 %v490, %v631
      %v645 = vadd.f32 %v494, %v635
      %v646 = vadd.f32 %v496, %v637
      %647 = vrot.lane.b32.xlu0 %v210, 1
      %v648 = vpop.permute.xlu0 %647
      %649 = vrot.lane.b32.xlu0 %v212, 1
      %v650 = vpop.permute.xlu0 %649
      %651 = vrot.lane.b32.xlu0 %v214, 1
      %v652 = vpop.permute.xlu0 %651
      %653 = vrot.lane.b32.xlu0 %v216, 1
      %v654 = vpop.permute.xlu0 %653
      %655 = vrot.lane.b32.xlu0 %v211, 1
      %v656 = vpop.permute.xlu0 %655
      %657 = vrot.lane.b32.xlu0 %v213, 1
      %v658 = vpop.permute.xlu0 %657
      %659 = vrot.lane.b32.xlu0 %v215, 1
      %v660 = vpop.permute.xlu0 %659
      %661 = vrot.lane.b32.xlu0 %v217, 1
      %v662 = vpop.permute.xlu0 %661
      %vm663 = vcmp.lt.s32.totalorder %v172, 1
      %v664 = vsel %vm663, %v648, %v656
      %v665 = vsel %vm663, %v650, %v658
      %v666 = vsel %vm663, %v652, %v660
      %v667 = vsel %vm663, %v654, %v662
      %v668 = vsel %vm663, %v656, %v648
      %v669 = vsel %vm663, %v658, %v650
      %v670 = vsel %vm663, %v660, %v652
      %v671 = vsel %vm663, %v662, %v654
      %v672 = vsel %vm198, %v668, 0.0
      %v673 = vsel %vm199, %v664, 0.0
      %v674 = vsel %vm198, %v669, 0.0
      %v675 = vsel %vm199, %v665, 0.0
      %v676 = vsel %vm198, %v670, 0.0
      %v677 = vsel %vm199, %v666, 0.0
      %v678 = vsel %vm198, %v671, 0.0
      %v679 = vsel %vm199, %v667, 0.0
      %s680 = scalar_lea.vmem %s1, 96
      %v681 = vld [vmem:[%s680] sm:$0xff]
      %v682 = vld [vmem:[%s680 + $0x8] sm:$0xff]
      %v683 = vld [vmem:[%s680 + $0x10] sm:$0xff]
      %v684 = vld [vmem:[%s680 + $0x18] sm:$0xff]
      %v686 = vsel %vm295, %v681, 0
      %v689 = vsel %vm295, %v682, 0
      %v692 = vsel %vm295, %v683, 0
      %v695 = vsel %vm295, %v684, 0
      %697 = vmatprep.subr.mxu0 %v673
      %698 = vmatpush1.msra.mxu0 %v672
      %699 = vmatprep.subr.mxu0 %v675
      %700 = vmatpush1.msra.mxu0 %v674
      %701 = vmatprep.subr.mxu0 %v677
      %702 = vmatpush1.msra.mxu0 %v676
      %703 = vmatprep.subr.mxu0 %v679
      %704 = vmatpush1.msra.mxu0 %v678
      %705 = vmatprep.subr.mxu0 0.0
      %706 = vmatpush1.msra.mxu0 0.0
      %707 = vmatprep.subr.mxu0 0.0
      %708 = vmatpush1.msra.mxu0 0.0
      %709 = vmatprep.subr.mxu0 0.0
      %710 = vmatpush1.msra.mxu0 0.0
      %711 = vmatprep.subr.mxu0 0.0
      %712 = vmatpush1.msra.mxu0 0.0
      %713 = vmatprep.subr.mxu0 0.0
      %714 = vmatpush1.msra.mxu0 0.0
      %715 = vmatprep.subr.mxu0 0.0
      %716 = vmatpush1.msra.mxu0 0.0
      %717 = vmatprep.subr.mxu0 0.0
      %718 = vmatpush1.msra.mxu0 0.0
      %719 = vmatprep.subr.mxu0 0.0
      %720 = vmatpush1.msra.mxu0 0.0
      %721 = vmatprep.subr.mxu0 0.0
      %722 = vmatpush1.msra.mxu0 0.0
      %723 = vmatprep.subr.mxu0 0.0
      %724 = vmatpush1.msra.mxu0 0.0
      %725 = vmatprep.subr.mxu0 0.0
      %726 = vmatpush1.msra.mxu0 0.0
      %727 = vmatprep.subr.mxu0 0.0
      %728 = vmatpush1.msra.mxu0 0.0
      %729 = vmatprep.subr.mxu0 0.0
      %730 = vmatpush1.msra.mxu0 0.0
      %731 = vmatprep.subr.mxu0 0.0
      %732 = vmatpush1.msra.mxu0 0.0
      %733 = vmatprep.subr.mxu0 0.0
      %734 = vmatpush1.msra.mxu0 0.0
      %735 = vmatprep.subr.mxu0 0.0
      %736 = vmatpush1.msra.mxu0 0.0
      %737 = vmatprep.subr.mxu0 0.0
      %738 = vmatpush1.msra.mxu0 0.0
      %739 = vmatprep.subr.mxu0 0.0
      %740 = vmatpush1.msra.mxu0 0.0
      %741 = vmatprep.subr.mxu0 0.0
      %742 = vmatpush1.msra.mxu0 0.0
      %743 = vmatprep.subr.mxu0 0.0
      %744 = vmatpush1.msra.mxu0 0.0
      %745 = vmatprep.subr.mxu0 0.0
      %746 = vmatpush1.msra.mxu0 0.0
      %747 = vmatprep.subr.mxu0 0.0
      %748 = vmatpush1.msra.mxu0 0.0
      %749 = vmatprep.subr.mxu0 0.0
      %750 = vmatpush1.msra.mxu0 0.0
      %751 = vmatprep.subr.mxu0 0.0
      %752 = vmatpush1.msra.mxu0 0.0
      %753 = vmatprep.subr.mxu0 0.0
      %754 = vmatpush1.msra.mxu0 0.0
      %755 = vmatprep.subr.mxu0 0.0
      %756 = vmatpush1.msra.mxu0 0.0
      %757 = vmatprep.subr.mxu0 0.0
      %758 = vmatpush1.msra.mxu0 0.0
      %759 = vmatprep.subr.mxu0 0.0
      %760 = vmatpush1.msra.mxu0 0.0
      %761 = vmatprep.mubr.f32.mxu0 0.0
      %762 = vmatmul.mubr.f32.gmra.mrb[0].mxu0 %v686
      %v763 = vpop.f32.mrb[0].mxu0
      %v764 = vadd.f32 0.0, %v763
      %v765 = vpop.f32.mrb[0].mxu0
      %v766 = vadd.f32 0.0, %v765
      %767 = vmatprep.mubr.f32.mxu0 0.0
      %768 = vmatmul.mubr.f32.gmra.mrb[0].mxu0 %v689
      %v769 = vpop.f32.mrb[0].mxu0
      %v770 = vadd.f32 0.0, %v769
      %v771 = vpop.f32.mrb[0].mxu0
      %v772 = vadd.f32 0.0, %v771
      %773 = vmatprep.mubr.f32.mxu0 0.0
      %774 = vmatmul.mubr.f32.gmra.mrb[0].mxu0 %v692
      %v775 = vpop.f32.mrb[0].mxu0
      %v776 = vadd.f32 0.0, %v775
      %v777 = vpop.f32.mrb[0].mxu0
      %v778 = vadd.f32 0.0, %v777
      %779 = vmatprep.mubr.f32.mxu0 0.0
      %780 = vmatmul.mubr.f32.gmra.mrb[0].mxu0 %v695
      %v781 = vpop.f32.mrb[0].mxu0
      %v782 = vadd.f32 0.0, %v781
      %v783 = vpop.f32.mrb[0].mxu0
      %v784 = vadd.f32 0.0, %v783
      %785 = vdwg.mxu0
      %v786 = vadd.f32 %v639, %v764
      %v787 = vadd.f32 %v640, %v766
      %v788 = vadd.f32 %v641, %v770
      %v789 = vadd.f32 %v642, %v772
      %v790 = vadd.f32 %v643, %v776
      %v791 = vadd.f32 %v644, %v778
      %v792 = vadd.f32 %v645, %v782
      %v793 = vadd.f32 %v646, %v784
      %s794 = scalar_lea.vmem %s1, 128
      %v795 = vld [vmem:[%s794] sm:$0xff]
      %v796 = vld [vmem:[%s794 + $0x8] sm:$0xff]
      %v797 = vld [vmem:[%s794 + $0x10] sm:$0xff]
      %v798 = vld [vmem:[%s794 + $0x18] sm:$0xff]
      %v800 = vsel %vm295, %v795, 0
      %v803 = vsel %vm295, %v796, 0
      %v806 = vsel %vm295, %v797, 0
      %v809 = vsel %vm295, %v798, 0
      %811 = vmatprep.subr.mxu0 %v211
      %812 = vmatpush1.msra.mxu0 %v210
      %813 = vmatprep.subr.mxu0 %v213
      %814 = vmatpush1.msra.mxu0 %v212
      %815 = vmatprep.subr.mxu0 %v215
      %816 = vmatpush1.msra.mxu0 %v214
      %817 = vmatprep.subr.mxu0 %v217
      %818 = vmatpush1.msra.mxu0 %v216
      %819 = vmatprep.subr.mxu0 0.0
      %820 = vmatpush1.msra.mxu0 0.0
      %821 = vmatprep.subr.mxu0 0.0
      %822 = vmatpush1.msra.mxu0 0.0
      %823 = vmatprep.subr.mxu0 0.0
      %824 = vmatpush1.msra.mxu0 0.0
      %825 = vmatprep.subr.mxu0 0.0
      %826 = vmatpush1.msra.mxu0 0.0
      %827 = vmatprep.subr.mxu0 0.0
      %828 = vmatpush1.msra.mxu0 0.0
      %829 = vmatprep.subr.mxu0 0.0
      %830 = vmatpush1.msra.mxu0 0.0
      %831 = vmatprep.subr.mxu0 0.0
      %832 = vmatpush1.msra.mxu0 0.0
      %833 = vmatprep.subr.mxu0 0.0
      %834 = vmatpush1.msra.mxu0 0.0
      %835 = vmatprep.subr.mxu0 0.0
      %836 = vmatpush1.msra.mxu0 0.0
      %837 = vmatprep.subr.mxu0 0.0
      %838 = vmatpush1.msra.mxu0 0.0
      %839 = vmatprep.subr.mxu0 0.0
      %840 = vmatpush1.msra.mxu0 0.0
      %841 = vmatprep.subr.mxu0 0.0
      %842 = vmatpush1.msra.mxu0 0.0
      %843 = vmatprep.subr.mxu0 0.0
      %844 = vmatpush1.msra.mxu0 0.0
      %845 = vmatprep.subr.mxu0 0.0
      %846 = vmatpush1.msra.mxu0 0.0
      %847 = vmatprep.subr.mxu0 0.0
      %848 = vmatpush1.msra.mxu0 0.0
      %849 = vmatprep.subr.mxu0 0.0
      %850 = vmatpush1.msra.mxu0 0.0
      %851 = vmatprep.subr.mxu0 0.0
      %852 = vmatpush1.msra.mxu0 0.0
      %853 = vmatprep.subr.mxu0 0.0
      %854 = vmatpush1.msra.mxu0 0.0
      %855 = vmatprep.subr.mxu0 0.0
      %856 = vmatpush1.msra.mxu0 0.0
      %857 = vmatprep.subr.mxu0 0.0
      %858 = vmatpush1.msra.mxu0 0.0
      %859 = vmatprep.subr.mxu0 0.0
      %860 = vmatpush1.msra.mxu0 0.0
      %861 = vmatprep.subr.mxu0 0.0
      %862 = vmatpush1.msra.mxu0 0.0
      %863 = vmatprep.subr.mxu0 0.0
      %864 = vmatpush1.msra.mxu0 0.0
      %865 = vmatprep.subr.mxu0 0.0
      %866 = vmatpush1.msra.mxu0 0.0
      %867 = vmatprep.subr.mxu0 0.0
      %868 = vmatpush1.msra.mxu0 0.0
      %869 = vmatprep.subr.mxu0 0.0
      %870 = vmatpush1.msra.mxu0 0.0
      %871 = vmatprep.subr.mxu0 0.0
      %872 = vmatpush1.msra.mxu0 0.0
      %873 = vmatprep.subr.mxu0 0.0
      %874 = vmatpush1.msra.mxu0 0.0
      %875 = vmatprep.mubr.f32.mxu0 0.0
      %876 = vmatmul.mubr.f32.gmra.mrb[0].mxu0 %v800
      %v877 = vpop.f32.mrb[0].mxu0
      %v878 = vadd.f32 0.0, %v877
      %v879 = vpop.f32.mrb[0].mxu0
      %v880 = vadd.f32 0.0, %v879
      %881 = vmatprep.mubr.f32.mxu0 0.0
      %882 = vmatmul.mubr.f32.gmra.mrb[0].mxu0 %v803
      %v883 = vpop.f32.mrb[0].mxu0
      %v884 = vadd.f32 0.0, %v883
      %v885 = vpop.f32.mrb[0].mxu0
      %v886 = vadd.f32 0.0, %v885
      %887 = vmatprep.mubr.f32.mxu0 0.0
      %888 = vmatmul.mubr.f32.gmra.mrb[0].mxu0 %v806
      %v889 = vpop.f32.mrb[0].mxu0
      %v890 = vadd.f32 0.0, %v889
      %v891 = vpop.f32.mrb[0].mxu0
      %v892 = vadd.f32 0.0, %v891
      %893 = vmatprep.mubr.f32.mxu0 0.0
      %894 = vmatmul.mubr.f32.gmra.mrb[0].mxu0 %v809
      %v895 = vpop.f32.mrb[0].mxu0
      %v896 = vadd.f32 0.0, %v895
      %v897 = vpop.f32.mrb[0].mxu0
      %v898 = vadd.f32 0.0, %v897
      %899 = vdwg.mxu0
      %v900 = vadd.f32 %v786, %v878
      %v901 = vadd.f32 %v787, %v880
      %v902 = vadd.f32 %v788, %v884
      %v903 = vadd.f32 %v789, %v886
      %v904 = vadd.f32 %v790, %v890
      %v905 = vadd.f32 %v791, %v892
      %v906 = vadd.f32 %v792, %v896
      %v907 = vadd.f32 %v793, %v898
      %908 = vrot.lane.b32.xlu0 %v210, 127
      %v909 = vpop.permute.xlu0 %908
      %910 = vrot.lane.b32.xlu0 %v212, 127
      %v911 = vpop.permute.xlu0 %910
      %912 = vrot.lane.b32.xlu0 %v214, 127
      %v913 = vpop.permute.xlu0 %912
      %914 = vrot.lane.b32.xlu0 %v216, 127
      %v915 = vpop.permute.xlu0 %914
      %916 = vrot.lane.b32.xlu0 %v211, 127
      %v917 = vpop.permute.xlu0 %916
      %918 = vrot.lane.b32.xlu0 %v213, 127
      %v919 = vpop.permute.xlu0 %918
      %920 = vrot.lane.b32.xlu0 %v215, 127
      %v921 = vpop.permute.xlu0 %920
      %922 = vrot.lane.b32.xlu0 %v217, 127
      %v923 = vpop.permute.xlu0 %922
      %vm924 = vcmp.lt.s32.totalorder %v172, 127
      %v925 = vsel %vm924, %v909, %v917
      %v926 = vsel %vm924, %v911, %v919
      %v927 = vsel %vm924, %v913, %v921
      %v928 = vsel %vm924, %v915, %v923
      %v929 = vsel %vm924, %v917, %v909
      %v930 = vsel %vm924, %v919, %v911
      %v931 = vsel %vm924, %v921, %v913
      %v932 = vsel %vm924, %v923, %v915
      %v933 = vsel %vm200, %v925, 0.0
      %v934 = vsel %vm201, %v929, 0.0
      %v935 = vsel %vm200, %v926, 0.0
      %v936 = vsel %vm201, %v930, 0.0
      %v937 = vsel %vm200, %v927, 0.0
      %v938 = vsel %vm201, %v931, 0.0
      %v939 = vsel %vm200, %v928, 0.0
      %v940 = vsel %vm201, %v932, 0.0
      %s941 = scalar_lea.vmem %s1, 160
      %v942 = vld [vmem:[%s941] sm:$0xff]
      %v943 = vld [vmem:[%s941 + $0x8] sm:$0xff]
      %v944 = vld [vmem:[%s941 + $0x10] sm:$0xff]
      %v945 = vld [vmem:[%s941 + $0x18] sm:$0xff]
      %v947 = vsel %vm295, %v942, 0
      %v950 = vsel %vm295, %v943, 0
      %v953 = vsel %vm295, %v944, 0
      %v956 = vsel %vm295, %v945, 0
      %958 = vmatprep.subr.mxu0 %v934
      %959 = vmatpush1.msra.mxu0 %v933
      %960 = vmatprep.subr.mxu0 %v936
      %961 = vmatpush1.msra.mxu0 %v935
      %962 = vmatprep.subr.mxu0 %v938
      %963 = vmatpush1.msra.mxu0 %v937
      %964 = vmatprep.subr.mxu0 %v940
      %965 = vmatpush1.msra.mxu0 %v939
      %966 = vmatprep.subr.mxu0 0.0
      %967 = vmatpush1.msra.mxu0 0.0
      %968 = vmatprep.subr.mxu0 0.0
      %969 = vmatpush1.msra.mxu0 0.0
      %970 = vmatprep.subr.mxu0 0.0
      %971 = vmatpush1.msra.mxu0 0.0
      %972 = vmatprep.subr.mxu0 0.0
      %973 = vmatpush1.msra.mxu0 0.0
      %974 = vmatprep.subr.mxu0 0.0
      %975 = vmatpush1.msra.mxu0 0.0
      %976 = vmatprep.subr.mxu0 0.0
      %977 = vmatpush1.msra.mxu0 0.0
      %978 = vmatprep.subr.mxu0 0.0
      %979 = vmatpush1.msra.mxu0 0.0
      %980 = vmatprep.subr.mxu0 0.0
      %981 = vmatpush1.msra.mxu0 0.0
      %982 = vmatprep.subr.mxu0 0.0
      %983 = vmatpush1.msra.mxu0 0.0
      %984 = vmatprep.subr.mxu0 0.0
      %985 = vmatpush1.msra.mxu0 0.0
      %986 = vmatprep.subr.mxu0 0.0
      %987 = vmatpush1.msra.mxu0 0.0
      %988 = vmatprep.subr.mxu0 0.0
      %989 = vmatpush1.msra.mxu0 0.0
      %990 = vmatprep.subr.mxu0 0.0
      %991 = vmatpush1.msra.mxu0 0.0
      %992 = vmatprep.subr.mxu0 0.0
      %993 = vmatpush1.msra.mxu0 0.0
      %994 = vmatprep.subr.mxu0 0.0
      %995 = vmatpush1.msra.mxu0 0.0
      %996 = vmatprep.subr.mxu0 0.0
      %997 = vmatpush1.msra.mxu0 0.0
      %998 = vmatprep.subr.mxu0 0.0
      %999 = vmatpush1.msra.mxu0 0.0
      %1000 = vmatprep.subr.mxu0 0.0
      %1001 = vmatpush1.msra.mxu0 0.0
      %1002 = vmatprep.subr.mxu0 0.0
      %1003 = vmatpush1.msra.mxu0 0.0
      %1004 = vmatprep.subr.mxu0 0.0
      %1005 = vmatpush1.msra.mxu0 0.0
      %1006 = vmatprep.subr.mxu0 0.0
      %1007 = vmatpush1.msra.mxu0 0.0
      %1008 = vmatprep.subr.mxu0 0.0
      %1009 = vmatpush1.msra.mxu0 0.0
      %1010 = vmatprep.subr.mxu0 0.0
      %1011 = vmatpush1.msra.mxu0 0.0
      %1012 = vmatprep.subr.mxu0 0.0
      %1013 = vmatpush1.msra.mxu0 0.0
      %1014 = vmatprep.subr.mxu0 0.0
      %1015 = vmatpush1.msra.mxu0 0.0
      %1016 = vmatprep.subr.mxu0 0.0
      %1017 = vmatpush1.msra.mxu0 0.0
      %1018 = vmatprep.subr.mxu0 0.0
      %1019 = vmatpush1.msra.mxu0 0.0
      %1020 = vmatprep.subr.mxu0 0.0
      %1021 = vmatpush1.msra.mxu0 0.0
      %1022 = vmatprep.mubr.f32.mxu0 0.0
      %1023 = vmatmul.mubr.f32.gmra.mrb[0].mxu0 %v947
      %v1024 = vpop.f32.mrb[0].mxu0
      %v1025 = vadd.f32 0.0, %v1024
      %v1026 = vpop.f32.mrb[0].mxu0
      %v1027 = vadd.f32 0.0, %v1026
      %1028 = vmatprep.mubr.f32.mxu0 0.0
      %1029 = vmatmul.mubr.f32.gmra.mrb[0].mxu0 %v950
      %v1030 = vpop.f32.mrb[0].mxu0
      %v1031 = vadd.f32 0.0, %v1030
      %v1032 = vpop.f32.mrb[0].mxu0
      %v1033 = vadd.f32 0.0, %v1032
      %1034 = vmatprep.mubr.f32.mxu0 0.0
      %1035 = vmatmul.mubr.f32.gmra.mrb[0].mxu0 %v953
      %v1036 = vpop.f32.mrb[0].mxu0
      %v1037 = vadd.f32 0.0, %v1036
      %v1038 = vpop.f32.mrb[0].mxu0
      %v1039 = vadd.f32 0.0, %v1038
      %1040 = vmatprep.mubr.f32.mxu0 0.0
      %1041 = vmatmul.mubr.f32.gmra.mrb[0].mxu0 %v956
      %v1042 = vpop.f32.mrb[0].mxu0
      %v1043 = vadd.f32 0.0, %v1042
      %v1044 = vpop.f32.mrb[0].mxu0
      %v1045 = vadd.f32 0.0, %v1044
      %1046 = vdwg.mxu0
      %v1047 = vadd.f32 %v900, %v1025
      %v1048 = vadd.f32 %v901, %v1027
      %v1049 = vadd.f32 %v902, %v1031
      %v1050 = vadd.f32 %v903, %v1033
      %v1051 = vadd.f32 %v904, %v1037
      %v1052 = vadd.f32 %v905, %v1039
      %v1053 = vadd.f32 %v906, %v1043
      %v1054 = vadd.f32 %v907, %v1045
      %1055 = vrot.lane.b32.xlu0 %v210, 113
      %v1056 = vpop.permute.xlu0 %1055
      %1057 = vrot.lane.b32.xlu0 %v212, 113
      %v1058 = vpop.permute.xlu0 %1057
      %1059 = vrot.lane.b32.xlu0 %v214, 113
      %v1060 = vpop.permute.xlu0 %1059
      %1061 = vrot.lane.b32.xlu0 %v216, 113
      %v1062 = vpop.permute.xlu0 %1061
      %1063 = vrot.lane.b32.xlu0 %v211, 113
      %v1064 = vpop.permute.xlu0 %1063
      %1065 = vrot.lane.b32.xlu0 %v213, 113
      %v1066 = vpop.permute.xlu0 %1065
      %1067 = vrot.lane.b32.xlu0 %v215, 113
      %v1068 = vpop.permute.xlu0 %1067
      %1069 = vrot.lane.b32.xlu0 %v217, 113
      %v1070 = vpop.permute.xlu0 %1069
      %vm1071 = vcmp.lt.s32.totalorder %v172, 113
      %v1072 = vsel %vm1071, %v1056, %v1064
      %v1073 = vsel %vm1071, %v1058, %v1066
      %v1074 = vsel %vm1071, %v1060, %v1068
      %v1075 = vsel %vm1071, %v1062, %v1070
      %v1076 = vsel %vm1071, %v1064, %v1056
      %v1077 = vsel %vm1071, %v1066, %v1058
      %v1078 = vsel %vm1071, %v1068, %v1060
      %v1079 = vsel %vm1071, %v1070, %v1062
      %vm1080 = vmand %vm204, %vm198
      %vm1081 = vmand %vm205, %vm199
      %v1082 = vsel %vm1080, %v1072, 0.0
      %v1083 = vsel %vm1081, %v1076, 0.0
      %v1084 = vsel %vm1080, %v1073, 0.0
      %v1085 = vsel %vm1081, %v1077, 0.0
      %v1086 = vsel %vm1080, %v1074, 0.0
      %v1087 = vsel %vm1081, %v1078, 0.0
      %v1088 = vsel %vm1080, %v1075, 0.0
      %v1089 = vsel %vm1081, %v1079, 0.0
      %s1090 = scalar_lea.vmem %s1, 192
      %v1091 = vld [vmem:[%s1090] sm:$0xff]
      %v1092 = vld [vmem:[%s1090 + $0x8] sm:$0xff]
      %v1093 = vld [vmem:[%s1090 + $0x10] sm:$0xff]
      %v1094 = vld [vmem:[%s1090 + $0x18] sm:$0xff]
      %v1096 = vsel %vm295, %v1091, 0
      %v1099 = vsel %vm295, %v1092, 0
      %v1102 = vsel %vm295, %v1093, 0
      %v1105 = vsel %vm295, %v1094, 0
      %1107 = vmatprep.subr.mxu0 %v1083
      %1108 = vmatpush1.msra.mxu0 %v1082
      %1109 = vmatprep.subr.mxu0 %v1085
      %1110 = vmatpush1.msra.mxu0 %v1084
      %1111 = vmatprep.subr.mxu0 %v1087
      %1112 = vmatpush1.msra.mxu0 %v1086
      %1113 = vmatprep.subr.mxu0 %v1089
      %1114 = vmatpush1.msra.mxu0 %v1088
      %1115 = vmatprep.subr.mxu0 0.0
      %1116 = vmatpush1.msra.mxu0 0.0
      %1117 = vmatprep.subr.mxu0 0.0
      %1118 = vmatpush1.msra.mxu0 0.0
      %1119 = vmatprep.subr.mxu0 0.0
      %1120 = vmatpush1.msra.mxu0 0.0
      %1121 = vmatprep.subr.mxu0 0.0
      %1122 = vmatpush1.msra.mxu0 0.0
      %1123 = vmatprep.subr.mxu0 0.0
      %1124 = vmatpush1.msra.mxu0 0.0
      %1125 = vmatprep.subr.mxu0 0.0
      %1126 = vmatpush1.msra.mxu0 0.0
      %1127 = vmatprep.subr.mxu0 0.0
      %1128 = vmatpush1.msra.mxu0 0.0
      %1129 = vmatprep.subr.mxu0 0.0
      %1130 = vmatpush1.msra.mxu0 0.0
      %1131 = vmatprep.subr.mxu0 0.0
      %1132 = vmatpush1.msra.mxu0 0.0
      %1133 = vmatprep.subr.mxu0 0.0
      %1134 = vmatpush1.msra.mxu0 0.0
      %1135 = vmatprep.subr.mxu0 0.0
      %1136 = vmatpush1.msra.mxu0 0.0
      %1137 = vmatprep.subr.mxu0 0.0
      %1138 = vmatpush1.msra.mxu0 0.0
      %1139 = vmatprep.subr.mxu0 0.0
      %1140 = vmatpush1.msra.mxu0 0.0
      %1141 = vmatprep.subr.mxu0 0.0
      %1142 = vmatpush1.msra.mxu0 0.0
      %1143 = vmatprep.subr.mxu0 0.0
      %1144 = vmatpush1.msra.mxu0 0.0
      %1145 = vmatprep.subr.mxu0 0.0
      %1146 = vmatpush1.msra.mxu0 0.0
      %1147 = vmatprep.subr.mxu0 0.0
      %1148 = vmatpush1.msra.mxu0 0.0
      %1149 = vmatprep.subr.mxu0 0.0
      %1150 = vmatpush1.msra.mxu0 0.0
      %1151 = vmatprep.subr.mxu0 0.0
      %1152 = vmatpush1.msra.mxu0 0.0
      %1153 = vmatprep.subr.mxu0 0.0
      %1154 = vmatpush1.msra.mxu0 0.0
      %1155 = vmatprep.subr.mxu0 0.0
      %1156 = vmatpush1.msra.mxu0 0.0
      %1157 = vmatprep.subr.mxu0 0.0
      %1158 = vmatpush1.msra.mxu0 0.0
      %1159 = vmatprep.subr.mxu0 0.0
      %1160 = vmatpush1.msra.mxu0 0.0
      %1161 = vmatprep.subr.mxu0 0.0
      %1162 = vmatpush1.msra.mxu0 0.0
      %1163 = vmatprep.subr.mxu0 0.0
      %1164 = vmatpush1.msra.mxu0 0.0
      %1165 = vmatprep.subr.mxu0 0.0
      %1166 = vmatpush1.msra.mxu0 0.0
      %1167 = vmatprep.subr.mxu0 0.0
      %1168 = vmatpush1.msra.mxu0 0.0
      %1169 = vmatprep.subr.mxu0 0.0
      %1170 = vmatpush1.msra.mxu0 0.0
      %1171 = vmatprep.mubr.f32.mxu0 0.0
      %1172 = vmatmul.mubr.f32.gmra.mrb[0].mxu0 %v1096
      %v1173 = vpop.f32.mrb[0].mxu0
      %v1174 = vadd.f32 0.0, %v1173
      %v1175 = vpop.f32.mrb[0].mxu0
      %v1176 = vadd.f32 0.0, %v1175
      %1177 = vmatprep.mubr.f32.mxu0 0.0
      %1178 = vmatmul.mubr.f32.gmra.mrb[0].mxu0 %v1099
      %v1179 = vpop.f32.mrb[0].mxu0
      %v1180 = vadd.f32 0.0, %v1179
      %v1181 = vpop.f32.mrb[0].mxu0
      %v1182 = vadd.f32 0.0, %v1181
      %1183 = vmatprep.mubr.f32.mxu0 0.0
      %1184 = vmatmul.mubr.f32.gmra.mrb[0].mxu0 %v1102
      %v1185 = vpop.f32.mrb[0].mxu0
      %v1186 = vadd.f32 0.0, %v1185
      %v1187 = vpop.f32.mrb[0].mxu0
      %v1188 = vadd.f32 0.0, %v1187
      %1189 = vmatprep.mubr.f32.mxu0 0.0
      %1190 = vmatmul.mubr.f32.gmra.mrb[0].mxu0 %v1105
      %v1191 = vpop.f32.mrb[0].mxu0
      %v1192 = vadd.f32 0.0, %v1191
      %v1193 = vpop.f32.mrb[0].mxu0
      %v1194 = vadd.f32 0.0, %v1193
      %1195 = vdwg.mxu0
      %v1196 = vadd.f32 %v1047, %v1174
      %v1197 = vadd.f32 %v1048, %v1176
      %v1198 = vadd.f32 %v1049, %v1180
      %v1199 = vadd.f32 %v1050, %v1182
      %v1200 = vadd.f32 %v1051, %v1186
      %v1201 = vadd.f32 %v1052, %v1188
      %v1202 = vadd.f32 %v1053, %v1192
      %v1203 = vadd.f32 %v1054, %v1194
      %1204 = vrot.lane.b32.xlu0 %v210, 112
      %v1205 = vpop.permute.xlu0 %1204
      %1206 = vrot.lane.b32.xlu0 %v212, 112
      %v1207 = vpop.permute.xlu0 %1206
      %1208 = vrot.lane.b32.xlu0 %v214, 112
      %v1209 = vpop.permute.xlu0 %1208
      %1210 = vrot.lane.b32.xlu0 %v216, 112
      %v1211 = vpop.permute.xlu0 %1210
      %1212 = vrot.lane.b32.xlu0 %v211, 112
      %v1213 = vpop.permute.xlu0 %1212
      %1214 = vrot.lane.b32.xlu0 %v213, 112
      %v1215 = vpop.permute.xlu0 %1214
      %1216 = vrot.lane.b32.xlu0 %v215, 112
      %v1217 = vpop.permute.xlu0 %1216
      %1218 = vrot.lane.b32.xlu0 %v217, 112
      %v1219 = vpop.permute.xlu0 %1218
      %vm1220 = vcmp.lt.s32.totalorder %v172, 112
      %v1221 = vsel %vm1220, %v1205, %v1213
      %v1222 = vsel %vm1220, %v1207, %v1215
      %v1223 = vsel %vm1220, %v1209, %v1217
      %v1224 = vsel %vm1220, %v1211, %v1219
      %v1225 = vsel %vm1220, %v1213, %v1205
      %v1226 = vsel %vm1220, %v1215, %v1207
      %v1227 = vsel %vm1220, %v1217, %v1209
      %v1228 = vsel %vm1220, %v1219, %v1211
      %v1229 = vsel %vm204, %v1221, 0.0
      %v1230 = vsel %vm205, %v1225, 0.0
      %v1231 = vsel %vm204, %v1222, 0.0
      %v1232 = vsel %vm205, %v1226, 0.0
      %v1233 = vsel %vm204, %v1223, 0.0
      %v1234 = vsel %vm205, %v1227, 0.0
      %v1235 = vsel %vm204, %v1224, 0.0
      %v1236 = vsel %vm205, %v1228, 0.0
      %s1237 = scalar_lea.vmem %s1, 224
      %v1238 = vld [vmem:[%s1237] sm:$0xff]
      %v1239 = vld [vmem:[%s1237 + $0x8] sm:$0xff]
      %v1240 = vld [vmem:[%s1237 + $0x10] sm:$0xff]
      %v1241 = vld [vmem:[%s1237 + $0x18] sm:$0xff]
      %v1243 = vsel %vm295, %v1238, 0
      %v1246 = vsel %vm295, %v1239, 0
      %v1249 = vsel %vm295, %v1240, 0
      %v1252 = vsel %vm295, %v1241, 0
      %1254 = vmatprep.subr.mxu0 %v1230
      %1255 = vmatpush1.msra.mxu0 %v1229
      %1256 = vmatprep.subr.mxu0 %v1232
      %1257 = vmatpush1.msra.mxu0 %v1231
      %1258 = vmatprep.subr.mxu0 %v1234
      %1259 = vmatpush1.msra.mxu0 %v1233
      %1260 = vmatprep.subr.mxu0 %v1236
      %1261 = vmatpush1.msra.mxu0 %v1235
      %1262 = vmatprep.subr.mxu0 0.0
      %1263 = vmatpush1.msra.mxu0 0.0
      %1264 = vmatprep.subr.mxu0 0.0
      %1265 = vmatpush1.msra.mxu0 0.0
      %1266 = vmatprep.subr.mxu0 0.0
      %1267 = vmatpush1.msra.mxu0 0.0
      %1268 = vmatprep.subr.mxu0 0.0
      %1269 = vmatpush1.msra.mxu0 0.0
      %1270 = vmatprep.subr.mxu0 0.0
      %1271 = vmatpush1.msra.mxu0 0.0
      %1272 = vmatprep.subr.mxu0 0.0
      %1273 = vmatpush1.msra.mxu0 0.0
      %1274 = vmatprep.subr.mxu0 0.0
      %1275 = vmatpush1.msra.mxu0 0.0
      %1276 = vmatprep.subr.mxu0 0.0
      %1277 = vmatpush1.msra.mxu0 0.0
      %1278 = vmatprep.subr.mxu0 0.0
      %1279 = vmatpush1.msra.mxu0 0.0
      %1280 = vmatprep.subr.mxu0 0.0
      %1281 = vmatpush1.msra.mxu0 0.0
      %1282 = vmatprep.subr.mxu0 0.0
      %1283 = vmatpush1.msra.mxu0 0.0
      %1284 = vmatprep.subr.mxu0 0.0
      %1285 = vmatpush1.msra.mxu0 0.0
      %1286 = vmatprep.subr.mxu0 0.0
      %1287 = vmatpush1.msra.mxu0 0.0
      %1288 = vmatprep.subr.mxu0 0.0
      %1289 = vmatpush1.msra.mxu0 0.0
      %1290 = vmatprep.subr.mxu0 0.0
      %1291 = vmatpush1.msra.mxu0 0.0
      %1292 = vmatprep.subr.mxu0 0.0
      %1293 = vmatpush1.msra.mxu0 0.0
      %1294 = vmatprep.subr.mxu0 0.0
      %1295 = vmatpush1.msra.mxu0 0.0
      %1296 = vmatprep.subr.mxu0 0.0
      %1297 = vmatpush1.msra.mxu0 0.0
      %1298 = vmatprep.subr.mxu0 0.0
      %1299 = vmatpush1.msra.mxu0 0.0
      %1300 = vmatprep.subr.mxu0 0.0
      %1301 = vmatpush1.msra.mxu0 0.0
      %1302 = vmatprep.subr.mxu0 0.0
      %1303 = vmatpush1.msra.mxu0 0.0
      %1304 = vmatprep.subr.mxu0 0.0
      %1305 = vmatpush1.msra.mxu0 0.0
      %1306 = vmatprep.subr.mxu0 0.0
      %1307 = vmatpush1.msra.mxu0 0.0
      %1308 = vmatprep.subr.mxu0 0.0
      %1309 = vmatpush1.msra.mxu0 0.0
      %1310 = vmatprep.subr.mxu0 0.0
      %1311 = vmatpush1.msra.mxu0 0.0
      %1312 = vmatprep.subr.mxu0 0.0
      %1313 = vmatpush1.msra.mxu0 0.0
      %1314 = vmatprep.subr.mxu0 0.0
      %1315 = vmatpush1.msra.mxu0 0.0
      %1316 = vmatprep.subr.mxu0 0.0
      %1317 = vmatpush1.msra.mxu0 0.0
      %1318 = vmatprep.mubr.f32.mxu0 0.0
      %1319 = vmatmul.mubr.f32.gmra.mrb[0].mxu0 %v1243
      %v1320 = vpop.f32.mrb[0].mxu0
      %v1321 = vadd.f32 0.0, %v1320
      %v1322 = vpop.f32.mrb[0].mxu0
      %v1323 = vadd.f32 0.0, %v1322
      %1324 = vmatprep.mubr.f32.mxu0 0.0
      %1325 = vmatmul.mubr.f32.gmra.mrb[0].mxu0 %v1246
      %v1326 = vpop.f32.mrb[0].mxu0
      %v1327 = vadd.f32 0.0, %v1326
      %v1328 = vpop.f32.mrb[0].mxu0
      %v1329 = vadd.f32 0.0, %v1328
      %1330 = vmatprep.mubr.f32.mxu0 0.0
      %1331 = vmatmul.mubr.f32.gmra.mrb[0].mxu0 %v1249
      %v1332 = vpop.f32.mrb[0].mxu0
      %v1333 = vadd.f32 0.0, %v1332
      %v1334 = vpop.f32.mrb[0].mxu0
      %v1335 = vadd.f32 0.0, %v1334
      %1336 = vmatprep.mubr.f32.mxu0 0.0
      %1337 = vmatmul.mubr.f32.gmra.mrb[0].mxu0 %v1252
      %v1338 = vpop.f32.mrb[0].mxu0
      %v1339 = vadd.f32 0.0, %v1338
      %v1340 = vpop.f32.mrb[0].mxu0
      %v1341 = vadd.f32 0.0, %v1340
      %1342 = vdwg.mxu0
      %v1343 = vadd.f32 %v1196, %v1321
      %v1344 = vadd.f32 %v1197, %v1323
      %v1345 = vadd.f32 %v1198, %v1327
      %v1346 = vadd.f32 %v1199, %v1329
      %v1347 = vadd.f32 %v1200, %v1333
      %v1348 = vadd.f32 %v1201, %v1335
      %v1349 = vadd.f32 %v1202, %v1339
      %v1350 = vadd.f32 %v1203, %v1341
      %1351 = vrot.lane.b32.xlu0 %v210, 111
      %v1352 = vpop.permute.xlu0 %1351
      %1353 = vrot.lane.b32.xlu0 %v212, 111
      %v1354 = vpop.permute.xlu0 %1353
      %1355 = vrot.lane.b32.xlu0 %v214, 111
      %v1356 = vpop.permute.xlu0 %1355
      %1357 = vrot.lane.b32.xlu0 %v216, 111
      %v1358 = vpop.permute.xlu0 %1357
      %1359 = vrot.lane.b32.xlu0 %v211, 111
      %v1360 = vpop.permute.xlu0 %1359
      %1361 = vrot.lane.b32.xlu0 %v213, 111
      %v1362 = vpop.permute.xlu0 %1361
      %1363 = vrot.lane.b32.xlu0 %v215, 111
      %v1364 = vpop.permute.xlu0 %1363
      %1365 = vrot.lane.b32.xlu0 %v217, 111
      %v1366 = vpop.permute.xlu0 %1365
      %vm1367 = vcmp.lt.s32.totalorder %v172, 111
      %v1368 = vsel %vm1367, %v1352, %v1360
      %v1369 = vsel %vm1367, %v1354, %v1362
      %v1370 = vsel %vm1367, %v1356, %v1364
      %v1371 = vsel %vm1367, %v1358, %v1366
      %v1372 = vsel %vm1367, %v1360, %v1352
      %v1373 = vsel %vm1367, %v1362, %v1354
      %v1374 = vsel %vm1367, %v1364, %v1356
      %v1375 = vsel %vm1367, %v1366, %v1358
      %vm1376 = vmand %vm204, %vm200
      %vm1377 = vmand %vm205, %vm201
      %v1378 = vsel %vm1376, %v1368, 0.0
      %v1379 = vsel %vm1377, %v1372, 0.0
      %v1380 = vsel %vm1376, %v1369, 0.0
      %v1381 = vsel %vm1377, %v1373, 0.0
      %v1382 = vsel %vm1376, %v1370, 0.0
      %v1383 = vsel %vm1377, %v1374, 0.0
      %v1384 = vsel %vm1376, %v1371, 0.0
      %v1385 = vsel %vm1377, %v1375, 0.0
      %s1386 = scalar_lea.vmem %s1, 256
      %v1387 = vld [vmem:[%s1386] sm:$0xff]
      %v1388 = vld [vmem:[%s1386 + $0x8] sm:$0xff]
      %v1389 = vld [vmem:[%s1386 + $0x10] sm:$0xff]
      %v1390 = vld [vmem:[%s1386 + $0x18] sm:$0xff]
      %v1392 = vsel %vm295, %v1387, 0
      %v1395 = vsel %vm295, %v1388, 0
      %v1398 = vsel %vm295, %v1389, 0
      %v1401 = vsel %vm295, %v1390, 0
      %1403 = vmatprep.subr.mxu0 %v1379
      %1404 = vmatpush1.msra.mxu0 %v1378
      %1405 = vmatprep.subr.mxu0 %v1381
      %1406 = vmatpush1.msra.mxu0 %v1380
      %1407 = vmatprep.subr.mxu0 %v1383
      %1408 = vmatpush1.msra.mxu0 %v1382
      %1409 = vmatprep.subr.mxu0 %v1385
      %1410 = vmatpush1.msra.mxu0 %v1384
      %1411 = vmatprep.subr.mxu0 0.0
      %1412 = vmatpush1.msra.mxu0 0.0
      %1413 = vmatprep.subr.mxu0 0.0
      %1414 = vmatpush1.msra.mxu0 0.0
      %1415 = vmatprep.subr.mxu0 0.0
      %1416 = vmatpush1.msra.mxu0 0.0
      %1417 = vmatprep.subr.mxu0 0.0
      %1418 = vmatpush1.msra.mxu0 0.0
      %1419 = vmatprep.subr.mxu0 0.0
      %1420 = vmatpush1.msra.mxu0 0.0
      %1421 = vmatprep.subr.mxu0 0.0
      %1422 = vmatpush1.msra.mxu0 0.0
      %1423 = vmatprep.subr.mxu0 0.0
      %1424 = vmatpush1.msra.mxu0 0.0
      %1425 = vmatprep.subr.mxu0 0.0
      %1426 = vmatpush1.msra.mxu0 0.0
      %1427 = vmatprep.subr.mxu0 0.0
      %1428 = vmatpush1.msra.mxu0 0.0
      %1429 = vmatprep.subr.mxu0 0.0
      %1430 = vmatpush1.msra.mxu0 0.0
      %1431 = vmatprep.subr.mxu0 0.0
      %1432 = vmatpush1.msra.mxu0 0.0
      %1433 = vmatprep.subr.mxu0 0.0
      %1434 = vmatpush1.msra.mxu0 0.0
      %1435 = vmatprep.subr.mxu0 0.0
      %1436 = vmatpush1.msra.mxu0 0.0
      %1437 = vmatprep.subr.mxu0 0.0
      %1438 = vmatpush1.msra.mxu0 0.0
      %1439 = vmatprep.subr.mxu0 0.0
      %1440 = vmatpush1.msra.mxu0 0.0
      %1441 = vmatprep.subr.mxu0 0.0
      %1442 = vmatpush1.msra.mxu0 0.0
      %1443 = vmatprep.subr.mxu0 0.0
      %1444 = vmatpush1.msra.mxu0 0.0
      %1445 = vmatprep.subr.mxu0 0.0
      %1446 = vmatpush1.msra.mxu0 0.0
      %1447 = vmatprep.subr.mxu0 0.0
      %1448 = vmatpush1.msra.mxu0 0.0
      %1449 = vmatprep.subr.mxu0 0.0
      %1450 = vmatpush1.msra.mxu0 0.0
      %1451 = vmatprep.subr.mxu0 0.0
      %1452 = vmatpush1.msra.mxu0 0.0
      %1453 = vmatprep.subr.mxu0 0.0
      %1454 = vmatpush1.msra.mxu0 0.0
      %1455 = vmatprep.subr.mxu0 0.0
      %1456 = vmatpush1.msra.mxu0 0.0
      %1457 = vmatprep.subr.mxu0 0.0
      %1458 = vmatpush1.msra.mxu0 0.0
      %1459 = vmatprep.subr.mxu0 0.0
      %1460 = vmatpush1.msra.mxu0 0.0
      %1461 = vmatprep.subr.mxu0 0.0
      %1462 = vmatpush1.msra.mxu0 0.0
      %1463 = vmatprep.subr.mxu0 0.0
      %1464 = vmatpush1.msra.mxu0 0.0
      %1465 = vmatprep.subr.mxu0 0.0
      %1466 = vmatpush1.msra.mxu0 0.0
      %1467 = vmatprep.mubr.f32.mxu0 0.0
      %1468 = vmatmul.mubr.f32.gmra.mrb[0].mxu0 %v1392
      %v1469 = vpop.f32.mrb[0].mxu0
      %v1470 = vadd.f32 0.0, %v1469
      %v1471 = vpop.f32.mrb[0].mxu0
      %v1472 = vadd.f32 0.0, %v1471
      %1473 = vmatprep.mubr.f32.mxu0 0.0
      %1474 = vmatmul.mubr.f32.gmra.mrb[0].mxu0 %v1395
      %v1475 = vpop.f32.mrb[0].mxu0
      %v1476 = vadd.f32 0.0, %v1475
      %v1477 = vpop.f32.mrb[0].mxu0
      %v1478 = vadd.f32 0.0, %v1477
      %1479 = vmatprep.mubr.f32.mxu0 0.0
      %1480 = vmatmul.mubr.f32.gmra.mrb[0].mxu0 %v1398
      %v1481 = vpop.f32.mrb[0].mxu0
      %v1482 = vadd.f32 0.0, %v1481
      %v1483 = vpop.f32.mrb[0].mxu0
      %v1484 = vadd.f32 0.0, %v1483
      %1485 = vmatprep.mubr.f32.mxu0 0.0
      %1486 = vmatmul.mubr.f32.gmra.mrb[0].mxu0 %v1401
      %v1487 = vpop.f32.mrb[0].mxu0
      %v1488 = vadd.f32 0.0, %v1487
      %v1489 = vpop.f32.mrb[0].mxu0
      %v1490 = vadd.f32 0.0, %v1489
      %1491 = vdwg.mxu0
      %v1492 = vadd.f32 %v1343, %v1470
      %v1493 = vadd.f32 %v1344, %v1472
      %v1494 = vadd.f32 %v1345, %v1476
      %v1495 = vadd.f32 %v1346, %v1478
      %v1496 = vadd.f32 %v1347, %v1482
      %v1497 = vadd.f32 %v1348, %v1484
      %v1498 = vadd.f32 %v1349, %v1488
      %v1499 = vadd.f32 %v1350, %v1490
      %v1500 = vadd.f32 %v1492, %v210
      %v1501 = vadd.f32 %v1493, %v211
      %v1502 = vadd.f32 %v1494, %v212
      %v1503 = vadd.f32 %v1495, %v213
      %v1504 = vadd.f32 %v1496, %v214
      %v1505 = vadd.f32 %v1497, %v215
      %v1506 = vadd.f32 %v1498, %v216
      %v1507 = vadd.f32 %v1499, %v217
      %1509 = vset.pattern.permute.xlu0 0
      %1510 = vperm.xlu0 %1509, %v206
      %v1511 = vpop.permute.xlu0 %1510
      %1514 = vset.pattern.permute.xlu0 0
      %1515 = vperm.xlu0 %1514, %v207
      %v1516 = vpop.permute.xlu0 %1515
      %1519 = vset.pattern.permute.xlu0 0
      %1520 = vperm.xlu0 %1519, %v208
      %v1521 = vpop.permute.xlu0 %1520
      %1524 = vset.pattern.permute.xlu0 0
      %1525 = vperm.xlu0 %1524, %v209
      %v1526 = vpop.permute.xlu0 %1525
      %v1528 = vadd.f32 %v1500, %v1511
      %v1529 = vadd.f32 %v1501, %v1511
      %v1530 = vadd.f32 %v1502, %v1516
      %v1531 = vadd.f32 %v1503, %v1516
      %v1532 = vadd.f32 %v1504, %v1521
      %v1533 = vadd.f32 %v1505, %v1521
      %v1534 = vadd.f32 %v1506, %v1526
      %v1535 = vadd.f32 %v1507, %v1526
      %v1536 = vmul.f32 %v1528, 0.5
      %v1537 = vmul.f32 %v1529, 0.5
      %v1538 = vmul.f32 %v1530, 0.5
      %v1539 = vmul.f32 %v1531, 0.5
      %v1540 = vmul.f32 %v1532, 0.5
      %v1541 = vmul.f32 %v1533, 0.5
      %v1542 = vmul.f32 %v1534, 0.5
      %v1543 = vmul.f32 %v1535, 0.5
      %v1544 = vmul.f32 %v1528, 0.70710677
      %v1545 = vmul.f32 %v1529, 0.70710677
      %v1546 = vmul.f32 %v1530, 0.70710677
      %v1547 = vmul.f32 %v1531, 0.70710677
      %v1548 = vmul.f32 %v1532, 0.70710677
      %v1549 = vmul.f32 %v1533, 0.70710677
      %v1550 = vmul.f32 %v1534, 0.70710677
      %v1551 = vmul.f32 %v1535, 0.70710677
      %v1552 = vand.u32 2147483647, %v1544
      %v1553 = vand.u32 2147483647, %v1545
      %v1554 = vand.u32 2147483647, %v1546
      %v1555 = vand.u32 2147483647, %v1547
      %v1556 = vand.u32 2147483647, %v1548
      %v1557 = vand.u32 2147483647, %v1549
      %v1558 = vand.u32 2147483647, %v1550
      %v1559 = vand.u32 2147483647, %v1551
      %v1560 = vmul.f32 %v1552, 0.3275911
      %v1561 = vmul.f32 %v1553, 0.3275911
      %v1562 = vmul.f32 %v1554, 0.3275911
      %v1563 = vmul.f32 %v1555, 0.3275911
      %v1564 = vmul.f32 %v1556, 0.3275911
      %v1565 = vmul.f32 %v1557, 0.3275911
      %v1566 = vmul.f32 %v1558, 0.3275911
      %v1567 = vmul.f32 %v1559, 0.3275911
      %v1568 = vadd.f32 %v1560, 1.0
      %v1569 = vadd.f32 %v1561, 1.0
      %v1570 = vadd.f32 %v1562, 1.0
      %v1571 = vadd.f32 %v1563, 1.0
      %v1572 = vadd.f32 %v1564, 1.0
      %v1573 = vadd.f32 %v1565, 1.0
      %v1574 = vadd.f32 %v1566, 1.0
      %v1575 = vadd.f32 %v1567, 1.0
      %v1576 = vrcp.pop %v1568
      %v1577 = vmul.f32 1.0, %v1576
      %v1578 = vrcp.pop %v1569
      %v1579 = vmul.f32 1.0, %v1578
      %v1580 = vrcp.pop %v1570
      %v1581 = vmul.f32 1.0, %v1580
      %v1582 = vrcp.pop %v1571
      %v1583 = vmul.f32 1.0, %v1582
      %v1584 = vrcp.pop %v1572
      %v1585 = vmul.f32 1.0, %v1584
      %v1586 = vrcp.pop %v1573
      %v1587 = vmul.f32 1.0, %v1586
      %v1588 = vrcp.pop %v1574
      %v1589 = vmul.f32 1.0, %v1588
      %v1590 = vrcp.pop %v1575
      %v1591 = vmul.f32 1.0, %v1590
      %v1592 = vmul.f32 %v1577, 1.0614054
      %v1593 = vmul.f32 %v1579, 1.0614054
      %v1594 = vmul.f32 %v1581, 1.0614054
      %v1595 = vmul.f32 %v1583, 1.0614054
      %v1596 = vmul.f32 %v1585, 1.0614054
      %v1597 = vmul.f32 %v1587, 1.0614054
      %v1598 = vmul.f32 %v1589, 1.0614054
      %v1599 = vmul.f32 %v1591, 1.0614054
      %v1600 = vadd.f32 %v1592, -1.4531521
      %v1601 = vadd.f32 %v1593, -1.4531521
      %v1602 = vadd.f32 %v1594, -1.4531521
      %v1603 = vadd.f32 %v1595, -1.4531521
      %v1604 = vadd.f32 %v1596, -1.4531521
      %v1605 = vadd.f32 %v1597, -1.4531521
      %v1606 = vadd.f32 %v1598, -1.4531521
      %v1607 = vadd.f32 %v1599, -1.4531521
      %v1608 = vmul.f32 %v1600, %v1577
      %v1609 = vmul.f32 %v1601, %v1579
      %v1610 = vmul.f32 %v1602, %v1581
      %v1611 = vmul.f32 %v1603, %v1583
      %v1612 = vmul.f32 %v1604, %v1585
      %v1613 = vmul.f32 %v1605, %v1587
      %v1614 = vmul.f32 %v1606, %v1589
      %v1615 = vmul.f32 %v1607, %v1591
      %v1616 = vadd.f32 %v1608, 1.4214138
      %v1617 = vadd.f32 %v1609, 1.4214138
      %v1618 = vadd.f32 %v1610, 1.4214138
      %v1619 = vadd.f32 %v1611, 1.4214138
      %v1620 = vadd.f32 %v1612, 1.4214138
      %v1621 = vadd.f32 %v1613, 1.4214138
      %v1622 = vadd.f32 %v1614, 1.4214138
      %v1623 = vadd.f32 %v1615, 1.4214138
      %v1624 = vmul.f32 %v1616, %v1577
      %v1625 = vmul.f32 %v1617, %v1579
      %v1626 = vmul.f32 %v1618, %v1581
      %v1627 = vmul.f32 %v1619, %v1583
      %v1628 = vmul.f32 %v1620, %v1585
      %v1629 = vmul.f32 %v1621, %v1587
      %v1630 = vmul.f32 %v1622, %v1589
      %v1631 = vmul.f32 %v1623, %v1591
      %v1632 = vadd.f32 %v1624, -0.28449672
      %v1633 = vadd.f32 %v1625, -0.28449672
      %v1634 = vadd.f32 %v1626, -0.28449672
      %v1635 = vadd.f32 %v1627, -0.28449672
      %v1636 = vadd.f32 %v1628, -0.28449672
      %v1637 = vadd.f32 %v1629, -0.28449672
      %v1638 = vadd.f32 %v1630, -0.28449672
      %v1639 = vadd.f32 %v1631, -0.28449672
      %v1640 = vmul.f32 %v1632, %v1577
      %v1641 = vmul.f32 %v1633, %v1579
      %v1642 = vmul.f32 %v1634, %v1581
      %v1643 = vmul.f32 %v1635, %v1583
      %v1644 = vmul.f32 %v1636, %v1585
      %v1645 = vmul.f32 %v1637, %v1587
      %v1646 = vmul.f32 %v1638, %v1589
      %v1647 = vmul.f32 %v1639, %v1591
      %v1648 = vadd.f32 %v1640, 0.2548296
      %v1649 = vadd.f32 %v1641, 0.2548296
      %v1650 = vadd.f32 %v1642, 0.2548296
      %v1651 = vadd.f32 %v1643, 0.2548296
      %v1652 = vadd.f32 %v1644, 0.2548296
      %v1653 = vadd.f32 %v1645, 0.2548296
      %v1654 = vadd.f32 %v1646, 0.2548296
      %v1655 = vadd.f32 %v1647, 0.2548296
      %v1656 = vmul.f32 %v1648, %v1577
      %v1657 = vmul.f32 %v1649, %v1579
      %v1658 = vmul.f32 %v1650, %v1581
      %v1659 = vmul.f32 %v1651, %v1583
      %v1660 = vmul.f32 %v1652, %v1585
      %v1661 = vmul.f32 %v1653, %v1587
      %v1662 = vmul.f32 %v1654, %v1589
      %v1663 = vmul.f32 %v1655, %v1591
      %v1664 = vmul.f32 %v1552, %v1552
      %v1665 = vmul.f32 %v1553, %v1553
      %v1666 = vmul.f32 %v1554, %v1554
      %v1667 = vmul.f32 %v1555, %v1555
      %v1668 = vmul.f32 %v1556, %v1556
      %v1669 = vmul.f32 %v1557, %v1557
      %v1670 = vmul.f32 %v1558, %v1558
      %v1671 = vmul.f32 %v1559, %v1559
      %v1672 = vsub.f32 0.0, %v1664
      %v1673 = vsub.f32 0.0, %v1665
      %v1674 = vsub.f32 0.0, %v1666
      %v1675 = vsub.f32 0.0, %v1667
      %v1676 = vsub.f32 0.0, %v1668
      %v1677 = vsub.f32 0.0, %v1669
      %v1678 = vsub.f32 0.0, %v1670
      %v1679 = vsub.f32 0.0, %v1671
      %v1680 = vmul.f32 %v1672, 1.442695
      %v1681 = vpow.pop %v1680
      %v1682 = vmul.f32 %v1673, 1.442695
      %v1683 = vpow.pop %v1682
      %v1684 = vmul.f32 %v1674, 1.442695
      %v1685 = vpow.pop %v1684
      %v1686 = vmul.f32 %v1675, 1.442695
      %v1687 = vpow.pop %v1686
      %v1688 = vmul.f32 %v1676, 1.442695
      %v1689 = vpow.pop %v1688
      %v1690 = vmul.f32 %v1677, 1.442695
      %v1691 = vpow.pop %v1690
      %v1692 = vmul.f32 %v1678, 1.442695
      %v1693 = vpow.pop %v1692
      %v1694 = vmul.f32 %v1679, 1.442695
      %v1695 = vpow.pop %v1694
      %v1696 = vmul.f32 %v1656, %v1681
      %v1697 = vmul.f32 %v1657, %v1683
      %v1698 = vmul.f32 %v1658, %v1685
      %v1699 = vmul.f32 %v1659, %v1687
      %v1700 = vmul.f32 %v1660, %v1689
      %v1701 = vmul.f32 %v1661, %v1691
      %v1702 = vmul.f32 %v1662, %v1693
      %v1703 = vmul.f32 %v1663, %v1695
      %v1704 = vsub.f32 1.0, %v1696
      %v1705 = vsub.f32 1.0, %v1697
      %v1706 = vsub.f32 1.0, %v1698
      %v1707 = vsub.f32 1.0, %v1699
      %v1708 = vsub.f32 1.0, %v1700
      %v1709 = vsub.f32 1.0, %v1701
      %v1710 = vsub.f32 1.0, %v1702
      %v1711 = vsub.f32 1.0, %v1703
      %vm1712 = vcmp.ge.f32.partialorder %v1544, 0.0
      %vm1713 = vcmp.ge.f32.partialorder %v1545, 0.0
      %vm1714 = vcmp.ge.f32.partialorder %v1546, 0.0
      %vm1715 = vcmp.ge.f32.partialorder %v1547, 0.0
      %vm1716 = vcmp.ge.f32.partialorder %v1548, 0.0
      %vm1717 = vcmp.ge.f32.partialorder %v1549, 0.0
      %vm1718 = vcmp.ge.f32.partialorder %v1550, 0.0
      %vm1719 = vcmp.ge.f32.partialorder %v1551, 0.0
      %v1720 = vsub.f32 0.0, %v1704
      %v1721 = vsub.f32 0.0, %v1705
      %v1722 = vsub.f32 0.0, %v1706
      %v1723 = vsub.f32 0.0, %v1707
      %v1724 = vsub.f32 0.0, %v1708
      %v1725 = vsub.f32 0.0, %v1709
      %v1726 = vsub.f32 0.0, %v1710
      %v1727 = vsub.f32 0.0, %v1711
      %v1728 = vsel %vm1712, %v1704, %v1720
      %v1729 = vsel %vm1713, %v1705, %v1721
      %v1730 = vsel %vm1714, %v1706, %v1722
      %v1731 = vsel %vm1715, %v1707, %v1723
      %v1732 = vsel %vm1716, %v1708, %v1724
      %v1733 = vsel %vm1717, %v1709, %v1725
      %v1734 = vsel %vm1718, %v1710, %v1726
      %v1735 = vsel %vm1719, %v1711, %v1727
      %v1736 = vadd.f32 %v1728, 1.0
      %v1737 = vadd.f32 %v1729, 1.0
      %v1738 = vadd.f32 %v1730, 1.0
      %v1739 = vadd.f32 %v1731, 1.0
      %v1740 = vadd.f32 %v1732, 1.0
      %v1741 = vadd.f32 %v1733, 1.0
      %v1742 = vadd.f32 %v1734, 1.0
      %v1743 = vadd.f32 %v1735, 1.0
      %v1744 = vmul.f32 %v1536, %v1736
      %v1745 = vmul.f32 %v1537, %v1737
      %v1746 = vmul.f32 %v1538, %v1738
      %v1747 = vmul.f32 %v1539, %v1739
      %v1748 = vmul.f32 %v1540, %v1740
      %v1749 = vmul.f32 %v1541, %v1741
      %v1750 = vmul.f32 %v1542, %v1742
      %v1751 = vmul.f32 %v1543, %v1743
      %1752 = vst [vmem:[%s170] sm:$0xff] %v1744
      %1753 = vst [vmem:[%s170 + $0x8] sm:$0xff] %v1745
      %1754 = vst [vmem:[%s170 + $0x10] sm:$0xff] %v1746
      %1755 = vst [vmem:[%s170 + $0x18] sm:$0xff] %v1747
      %1756 = vst [vmem:[%s170 + $0x20] sm:$0xff] %v1748
      %1757 = vst [vmem:[%s170 + $0x28] sm:$0xff] %v1749
      %1758 = vst [vmem:[%s170 + $0x30] sm:$0xff] %v1750
      %1759 = vst [vmem:[%s170 + $0x38] sm:$0xff] %v1751
      %p1760 = scmp.lt.s32.totalorder %s14, 1
      %s1761 = scalar_select %p1760, %s14, 1
      %s1762 = smul.addr %s1761, 8
      %s1763 = smul.addr %s1762, 8
      %s1764 = scalar_lea.vmem %s3, %s1763
      // Predicated region
      $region33: #{_rfdb_call.1} parent=31 // pred_check
        %p1765 = pneg %p100
      $region34: #{_rfdb_call.1} parent=31 // pred_check_branch
        %1767 = sbr.rel (%p1765) target = $region36
      $region35: #{_rfdb_call.1} parent=31 // pred_region
        _
      $region36: #{_rfdb_call.1} parent=31 // pred_fallthru
        _
    $region32: #{_rfdb_call.1} parent=5 // pred_fallthru
      _
    %p1768 = scmp.le.s32.totalorder 2, %s9
    // Predicated region
    $region37: #{_rfdb_call.1} parent=5 // pred_check
      %p1769 = pneg %p1768
    $region38: #{_rfdb_call.1} parent=5 // pred_check_branch
      %1771 = sbr.rel (%p1769) target = $region40
    $region39: #{_rfdb_call.1} parent=5 // pred_region
      %s1772 = ssub.s32 %s9, 2
      // Predicated region
      $region41: #{_rfdb_call.1} parent=39 // pred_check
        %p1773 = pneg %p106
      $region42: #{_rfdb_call.1} parent=39 // pred_check_branch
        %1775 = sbr.rel (%p1773) target = $region44
      $region43: #{_rfdb_call.1} parent=39 // pred_region
        %p1776 = scmp.lt.s32.totalorder %s15, 1
        %s1777 = scalar_select %p1776, %s15, 1
        %s1778 = smul.addr %s1777, 8
        %s1779 = smul.addr %s1778, 8
        %s1780 = scalar_lea.vmem %s3, %s1779
      $region44: #{_rfdb_call.1} parent=39 // pred_fallthru
        _
    $region40: #{_rfdb_call.1} parent=5 // pred_fallthru
      _
  $region6: #{_rfdb_call.1} parent=0 // loop_footer
    %s13 = sadd.s32 1, %s9
  $region7: #{_rfdb_call.1} parent=0 // loop_footer_branch
    %8 = sbr.rel target = $region3
  $region8: #{_rfdb_call.1} parent=0 // loop_exit
    _

</llo_original>
